<compile_context>
chip_gen: v7x
topology: tpu7x:2x2x1
jax: 0.10.0
libtpu: 0.0.40
codegen_flags: <defaults>
</compile_context>

<pallas_src>
import jax
import jax.numpy as jnp
from jax.experimental import pallas as pl
from jax.experimental.pallas import tpu as pltpu


def _round_up(x, m):
    return (x + m - 1) // m * m


def _make_flow_kernel(L, Dp, compute_dtype):
    """L layers, padded feature dim Dp; compute_dtype = matmul operand dtype."""

    def kernel(z_ref, mask_ref, w1_ref, b1_ref, w2_ref, b2_ref, x_ref, ld_ref):
        x0 = z_ref[...]                                   # (tile_b, Dp) f32
        ld0 = jnp.zeros((x0.shape[0], 1), jnp.float32)

        def layer(l, carry):
            x, ld = carry
            m = mask_ref[l]                               # (1, Dp)
            one_m = 1.0 - m
            zm = (x * m).astype(compute_dtype)

            # Fused first layer of BOTH conditioner nets (shared LHS): one MXU push.
            h = jnp.tanh(
                jnp.dot(zm, w1_ref[l], preferred_element_type=jnp.float32)
                + b1_ref[l])                              # (tile_b, Hc)

            # Fused block-diagonal second layer: columns [:Dp] -> scale net,
            # columns [Dp:] -> translation net.
            o = (jnp.dot(h.astype(compute_dtype), w2_ref[l],
                         preferred_element_type=jnp.float32)
                 + b2_ref[l])                             # (tile_b, 2*Dp)
            s = jnp.tanh(o[:, :Dp])
            t = o[:, Dp:]

            # Affine coupling update + log|det J| accumulation (all f32).
            x = m * x + one_m * (x * jnp.exp(s) + t)
            ld = ld + jnp.sum(one_m * s, axis=-1, keepdims=True)
            return x, ld

        x, ld = jax.lax.fori_loop(0, L, layer, (x0, ld0), unroll=(L <= 8))
        x_ref[...] = x
        ld_ref[...] = ld

    return kernel


def prepare_flow_params(params, *, use_bf16_matmul=True):
    """One-time packing: pad, fuse s/t conditioner weights, cast.

    Padded mask entries are 1.0 => padded features are identity-mapped with
    zero log-det contribution; padded weight/bias entries are 0.
    use_bf16_matmul: bf16 matmul operands (f32 accumulation).  Recommended on
    all generations (halves weight DMA, native MXU rate); use False for strict
    f32 parity with the PyTorch module.
    """
    mask, w1s, b1s, w2s, b2s, w1t, b1t, w2t, b2t = params
    L, D, H = w1s.shape
    f32 = jnp.float32
    cdt = jnp.bfloat16 if use_bf16_matmul else f32

    Dp = _round_up(D, 128)
    Hc = _round_up(2 * H, 128)   # pack s/t hidden units THEN pad (128, not 2*128)

    mask_p = jnp.ones((L, 1, Dp), f32).at[:, 0, :D].set(mask.astype(f32))

    # Fused first layer: columns [:H] = scale net, [H:2H] = translation net.
    w1 = jnp.zeros((L, Dp, Hc), f32)
    w1 = w1.at[:, :D, :H].set(w1s.astype(f32))
    w1 = w1.at[:, :D, H:2 * H].set(w1t.astype(f32))
    b1 = jnp.zeros((L, 1, Hc), f32)
    b1 = b1.at[:, 0, :H].set(b1s.astype(f32))
    b1 = b1.at[:, 0, H:2 * H].set(b1t.astype(f32))

    # Fused block-diagonal second layer: s-hidden rows -> s output columns,
    # t-hidden rows -> t output columns (padded hidden rows have h == 0).
    w2 = jnp.zeros((L, Hc, 2 * Dp), f32)
    w2 = w2.at[:, :H, :D].set(w2s.astype(f32))
    w2 = w2.at[:, H:2 * H, Dp:Dp + D].set(w2t.astype(f32))
    b2 = jnp.zeros((L, 1, 2 * Dp), f32)
    b2 = b2.at[:, 0, :D].set(b2s.astype(f32))
    b2 = b2.at[:, 0, Dp:Dp + D].set(b2t.astype(f32))

    return {
        "mask": mask_p,
        "w1": w1.astype(cdt), "b1": b1,
        "w2": w2.astype(cdt), "b2": b2,
        "L": L, "D": D, "Dp": Dp, "Hc": Hc,
        "compute_dtype": cdt,
    }


def flow_forward(z, packed, *, tile_b=None):
    """Returns (x, sum_log_det_J) exactly like Flow.forward."""
    L, D, Dp, Hc = packed["L"], packed["D"], packed["Dp"], packed["Hc"]
    cdt = packed["compute_dtype"]
    f32 = jnp.float32
    B = z.shape[0]

    # Batch tiling: big tiles (M is streamed through the MXU, so large tile_b is
    # ~free compute-wise and divides per-grid-step overhead), but keep >= 2
    # tiles when B allows it so v7x's 2 TensorCores both get work.
    if tile_b is None:
        tile_b = min(_round_up(B, 8), 512)
        if B >= 16 and _round_up(B, tile_b) // tile_b < 2:
            tile_b = _round_up((B + 1) // 2, 8)
    tile_b = max(8, _round_up(tile_b, 8))
    Bp = _round_up(B, tile_b)
    nb = Bp // tile_b

    z_p = jnp.zeros((Bp, Dp), f32).at[:B, :D].set(z.astype(f32))

    # VMEM budget for the resident-weight layout (inputs are double-buffered by
    # the pipeline even with constant index_maps, so count x2).
    wbytes = jnp.dtype(cdt).itemsize
    weight_bytes = (L * (Dp * Hc + Hc * 2 * Dp) * wbytes
                    + L * (Dp + Hc + 2 * Dp) * 4)                 # mask + biases
    act_bytes = tile_b * (Dp + Dp + 1 + Hc + 2 * Dp) * 4          # z/x/ld/h/o tiles
    resident_bytes = 2 * (weight_bytes + tile_b * Dp * 4) + 2 * act_bytes
    if resident_bytes > (56 << 20):   # conservative: must also fit v7x's 64 MiB VMEM
        # TODO(synk): fall back to the streaming (nb, L) per-layer-weight design
        # when L*D*H is too large for VMEM residency.
        raise ValueError("Flow weights too large for the VMEM-resident kernel.")
    vmem_limit = int(min(max(resident_bytes + (8 << 20), 32 << 20), 100 << 20))

    kernel = _make_flow_kernel(L, Dp, cdt)

    out_x, out_ld = pl.pallas_call(
        kernel,
        out_shape=(jax.ShapeDtypeStruct((Bp, Dp), f32),
                   jax.ShapeDtypeStruct((Bp, 1), f32)),
        grid_spec=pltpu.PrefetchScalarGridSpec(
            num_scalar_prefetch=0,
            grid=(nb,),
            in_specs=[
                pl.BlockSpec((tile_b, Dp), lambda i: (i, 0)),        # z tile
                pl.BlockSpec((L, 1, Dp), lambda i: (0, 0, 0)),       # mask (all L, resident)
                pl.BlockSpec((L, Dp, Hc), lambda i: (0, 0, 0)),      # W1 fused (resident)
                pl.BlockSpec((L, 1, Hc), lambda i: (0, 0, 0)),       # b1 fused
                pl.BlockSpec((L, Hc, 2 * Dp), lambda i: (0, 0, 0)),  # W2 fused block-diag
                pl.BlockSpec((L, 1, 2 * Dp), lambda i: (0, 0, 0)),   # b2 fused
            ],
            out_specs=(pl.BlockSpec((tile_b, Dp), lambda i: (i, 0)),  # x
                       pl.BlockSpec((tile_b, 1), lambda i: (i, 0))),  # sum log|det J|
        ),
        compiler_params=pltpu.CompilerParams(
            dimension_semantics=("parallel",),
            vmem_limit_bytes=vmem_limit),
    )(z_p, packed["mask"], packed["w1"], packed["b1"], packed["w2"], packed["b2"])

    return out_x[:B, :D], out_ld[:B, 0]


def flow_forward_ref(z, params):
    """Pure-JAX reference mirroring Flow.forward over affine coupling layers."""
    mask, w1s, b1s, w2s, b2s, w1t, b1t, w2t, b2t = params
    x = z
    ld = jnp.zeros((z.shape[0],), jnp.float32)
    for l in range(mask.shape[0]):
        m = mask[l]
        zm = x * m
        h_s = jnp.tanh(zm @ w1s[l] + b1s[l])
        s = jnp.tanh(h_s @ w2s[l] + b2s[l])
        h_t = jnp.tanh(zm @ w1t[l] + b1t[l])
        t = h_t @ w2t[l] + b2t[l]
        x = m * x + (1.0 - m) * (x * jnp.exp(s) + t)
        ld = ld + jnp.sum((1.0 - m) * s, axis=-1)
    return x, ld


def make_params(key, num_layers, feature_dim, hidden_dim):
    """Deterministic synthetic parameters (no checkpoint loading)."""
    L, D, H = num_layers, feature_dim, hidden_dim
    ks = jax.random.split(key, 8)
    scale = 0.1
    w1s = scale * jax.random.normal(ks[0], (L, D, H), jnp.float32)
    b1s = scale * jax.random.normal(ks[1], (L, H), jnp.float32)
    w2s = scale * jax.random.normal(ks[2], (L, H, D), jnp.float32)
    b2s = scale * jax.random.normal(ks[3], (L, D), jnp.float32)
    w1t = scale * jax.random.normal(ks[4], (L, D, H), jnp.float32)
    b1t = scale * jax.random.normal(ks[5], (L, H), jnp.float32)
    w2t = scale * jax.random.normal(ks[6], (L, H, D), jnp.float32)
    b2t = scale * jax.random.normal(ks[7], (L, D), jnp.float32)
    feat = jnp.arange(D)
    mask = jnp.stack([(feat % 2 == (l % 2)).astype(jnp.float32)
                      for l in range(L)])
    return (mask, w1s, b1s, w2s, b2s, w1t, b1t, w2t, b2t)


# TODO(synk): the base torch.distributions.Distribution (used only by
# log_prob/sample/loss, not by forward) has no Pallas equivalent and is not modeled.

if __name__ == "__main__":
    B, D, H, L = 24, 8, 32, 4
    key = jax.random.PRNGKey(0)
    kz, kp = jax.random.split(key)
    z = jax.random.normal(kz, (B, D), jnp.float32)
    params = make_params(kp, L, D, H)
    x_ref, ld_ref = flow_forward_ref(z, params)

    # Strict f32 parity with the PyTorch module.
    packed_f32 = prepare_flow_params(params, use_bf16_matmul=False)
    x, ld = flow_forward(z, packed_f32)              # auto tile_b -> 2 batch tiles
    x2, ld2 = flow_forward(z, packed_f32, tile_b=8)  # 3 exact batch tiles
    jax.block_until_ready((x, ld, x2, ld2))
    assert jnp.allclose(x, x_ref, atol=1e-5, rtol=1e-5), "x mismatch (f32)"
    assert jnp.allclose(ld, ld_ref, atol=1e-5, rtol=1e-5), "log_det mismatch (f32)"
    assert jnp.allclose(x2, x_ref, atol=1e-5, rtol=1e-5), "x mismatch (f32, tile_b=8)"
    assert jnp.allclose(ld2, ld_ref, atol=1e-5, rtol=1e-5), "log_det mismatch (f32, tile_b=8)"

    # Production default: bf16 matmul operands (f32 accumulation), loose tolerance.
    packed_bf16 = prepare_flow_params(params, use_bf16_matmul=True)
    xb, ldb = flow_forward(z, packed_bf16)
    jax.block_until_ready((xb, ldb))
    assert jnp.allclose(xb, x_ref, atol=1e-1, rtol=1e-1), "x mismatch (bf16)"
    assert jnp.allclose(ldb, ld_ref, atol=1e-1, rtol=1e-1), "log_det mismatch (bf16)"

    print("KERNEL_OK")
</pallas_src>

<mosaic_0001>
module attributes {stable_mosaic.version = 11 : i64} {
  func.func @kernel(%arg0: i32, %arg1: memref<16x128xf32, #tpu.memory_space<vmem>>, %arg2: memref<4x1x128xf32, #tpu.memory_space<vmem>>, %arg3: memref<4x128x128xf32, #tpu.memory_space<vmem>>, %arg4: memref<4x1x128xf32, #tpu.memory_space<vmem>>, %arg5: memref<4x128x256xf32, #tpu.memory_space<vmem>>, %arg6: memref<4x1x256xf32, #tpu.memory_space<vmem>>, %arg7: memref<16x128xf32, #tpu.memory_space<vmem>>, %arg8: memref<16x1xf32, #tpu.memory_space<vmem>>) attributes {dimension_semantics = [#tpu.dimension_semantics<parallel>], iteration_bounds = array<i64: 2>, scalar_prefetch = 0 : i64, scratch_operands = 0 : i64, tpu.core_type = #tpu.core_type<tc>, window_params = [{transform_indices = @transform_0, window_bounds = array<i64: 16, 128>}, {pipeline_mode = #tpu.pipeline_mode<synchronous>, transform_indices = @transform_1, window_bounds = array<i64: 4, 1, 128>}, {pipeline_mode = #tpu.pipeline_mode<synchronous>, transform_indices = @transform_2, window_bounds = array<i64: 4, 128, 128>}, {pipeline_mode = #tpu.pipeline_mode<synchronous>, transform_indices = @transform_3, window_bounds = array<i64: 4, 1, 128>}, {pipeline_mode = #tpu.pipeline_mode<synchronous>, transform_indices = @transform_4, window_bounds = array<i64: 4, 128, 256>}, {pipeline_mode = #tpu.pipeline_mode<synchronous>, transform_indices = @transform_5, window_bounds = array<i64: 4, 1, 256>}, {transform_indices = @transform_6, window_bounds = array<i64: 16, 128>}, {transform_indices = @transform_7, window_bounds = array<i64: 16, 1>}]} {
    %c0 = arith.constant 0 : index
    %c0_0 = arith.constant 0 : index
    %0 = vector.load %arg1[%c0, %c0_0] : memref<16x128xf32, #tpu.memory_space<vmem>>, vector<16x128xf32>
    %cst = arith.constant 0.000000e+00 : f32
    %1 = vector.broadcast %cst : f32 to vector<16x1xf32>
    %c0_i32 = arith.constant 0 : i32
    %2 = arith.index_cast %c0_i32 : i32 to index
    %c0_1 = arith.constant 0 : index
    %c0_2 = arith.constant 0 : index
    %3 = vector.load %arg2[%2, %c0_1, %c0_2] : memref<4x1x128xf32, #tpu.memory_space<vmem>>, vector<1x1x128xf32>
    %4 = vector.shape_cast %3 : vector<1x1x128xf32> to vector<1x128xf32>
    %cst_3 = arith.constant 1.000000e+00 : f32
    %5 = vector.broadcast %cst_3 : f32 to vector<1x128xf32>
    %6 = arith.subf %5, %4 : vector<1x128xf32>
    %7 = vector.broadcast %4 : vector<1x128xf32> to vector<16x128xf32>
    %8 = arith.mulf %0, %7 : vector<16x128xf32>
    %9 = arith.index_cast %c0_i32 : i32 to index
    %c0_4 = arith.constant 0 : index
    %c0_5 = arith.constant 0 : index
    %10 = vector.load %arg3[%9, %c0_4, %c0_5] : memref<4x128x128xf32, #tpu.memory_space<vmem>>, vector<1x128x128xf32>
    %11 = vector.shape_cast %10 : vector<1x128x128xf32> to vector<128x128xf32>
    %cst_6 = arith.constant dense<0.000000e+00> : vector<16x128xf32>
    %12 = tpu.matmul %8, %11, %cst_6 {dimension_numbers = #tpu.dot_dimension_numbers<[1], [0], [0], [1], [0, 0, 1, 1], [], []>} : vector<16x128xf32>, vector<128x128xf32>, vector<16x128xf32> -> vector<16x128xf32>
    %13 = arith.index_cast %c0_i32 : i32 to index
    %c0_7 = arith.constant 0 : index
    %c0_8 = arith.constant 0 : index
    %14 = vector.load %arg4[%13, %c0_7, %c0_8] : memref<4x1x128xf32, #tpu.memory_space<vmem>>, vector<1x1x128xf32>
    %15 = vector.shape_cast %14 : vector<1x1x128xf32> to vector<1x128xf32>
    %16 = vector.broadcast %15 : vector<1x128xf32> to vector<16x128xf32>
    %17 = arith.addf %12, %16 : vector<16x128xf32>
    %18 = math.tanh %17 : vector<16x128xf32>
    %19 = arith.index_cast %c0_i32 : i32 to index
    %c0_9 = arith.constant 0 : index
    %c0_10 = arith.constant 0 : index
    %20 = vector.load %arg5[%19, %c0_9, %c0_10] : memref<4x128x256xf32, #tpu.memory_space<vmem>>, vector<1x128x256xf32>
    %21 = vector.shape_cast %20 : vector<1x128x256xf32> to vector<128x256xf32>
    %cst_11 = arith.constant dense<0.000000e+00> : vector<16x256xf32>
    %22 = tpu.matmul %18, %21, %cst_11 {dimension_numbers = #tpu.dot_dimension_numbers<[1], [0], [0], [1], [0, 0, 1, 1], [], []>} : vector<16x128xf32>, vector<128x256xf32>, vector<16x256xf32> -> vector<16x256xf32>
    %23 = arith.index_cast %c0_i32 : i32 to index
    %c0_12 = arith.constant 0 : index
    %c0_13 = arith.constant 0 : index
    %24 = vector.load %arg6[%23, %c0_12, %c0_13] : memref<4x1x256xf32, #tpu.memory_space<vmem>>, vector<1x1x256xf32>
    %25 = vector.shape_cast %24 : vector<1x1x256xf32> to vector<1x256xf32>
    %26 = vector.broadcast %25 : vector<1x256xf32> to vector<16x256xf32>
    %27 = arith.addf %22, %26 : vector<16x256xf32>
    %28 = vector.extract_strided_slice %27 {offsets = [0, 0], sizes = [16, 128], strides = [1, 1]} : vector<16x256xf32> to vector<16x128xf32>
    %29 = math.tanh %28 : vector<16x128xf32>
    %30 = vector.extract_strided_slice %27 {offsets = [0, 128], sizes = [16, 128], strides = [1, 1]} : vector<16x256xf32> to vector<16x128xf32>
    %31 = vector.broadcast %4 : vector<1x128xf32> to vector<16x128xf32>
    %32 = arith.mulf %31, %0 : vector<16x128xf32>
    %33 = math.exp %29 : vector<16x128xf32>
    %34 = arith.mulf %0, %33 : vector<16x128xf32>
    %35 = arith.addf %34, %30 : vector<16x128xf32>
    %36 = vector.broadcast %6 : vector<1x128xf32> to vector<16x128xf32>
    %37 = arith.mulf %36, %35 : vector<16x128xf32>
    %38 = arith.addf %32, %37 : vector<16x128xf32>
    %39 = vector.broadcast %6 : vector<1x128xf32> to vector<16x128xf32>
    %40 = arith.mulf %39, %29 : vector<16x128xf32>
    %cst_14 = arith.constant dense<0.000000e+00> : vector<16xf32>
    %41 = vector.multi_reduction <add>, %40, %cst_14 [1] : vector<16x128xf32> to vector<16xf32>
    %42 = vector.shape_cast %41 : vector<16xf32> to vector<16x1xf32>
    %43 = arith.addf %1, %42 : vector<16x1xf32>
    %c1_i32 = arith.constant 1 : i32
    %44 = arith.index_cast %c1_i32 : i32 to index
    %c0_15 = arith.constant 0 : index
    %c0_16 = arith.constant 0 : index
    %45 = vector.load %arg2[%44, %c0_15, %c0_16] : memref<4x1x128xf32, #tpu.memory_space<vmem>>, vector<1x1x128xf32>
    %46 = vector.shape_cast %45 : vector<1x1x128xf32> to vector<1x128xf32>
    %cst_17 = arith.constant 1.000000e+00 : f32
    %47 = vector.broadcast %cst_17 : f32 to vector<1x128xf32>
    %48 = arith.subf %47, %46 : vector<1x128xf32>
    %49 = vector.broadcast %46 : vector<1x128xf32> to vector<16x128xf32>
    %50 = arith.mulf %38, %49 : vector<16x128xf32>
    %51 = arith.index_cast %c1_i32 : i32 to index
    %c0_18 = arith.constant 0 : index
    %c0_19 = arith.constant 0 : index
    %52 = vector.load %arg3[%51, %c0_18, %c0_19] : memref<4x128x128xf32, #tpu.memory_space<vmem>>, vector<1x128x128xf32>
    %53 = vector.shape_cast %52 : vector<1x128x128xf32> to vector<128x128xf32>
    %cst_20 = arith.constant dense<0.000000e+00> : vector<16x128xf32>
    %54 = tpu.matmul %50, %53, %cst_20 {dimension_numbers = #tpu.dot_dimension_numbers<[1], [0], [0], [1], [0, 0, 1, 1], [], []>} : vector<16x128xf32>, vector<128x128xf32>, vector<16x128xf32> -> vector<16x128xf32>
    %55 = arith.index_cast %c1_i32 : i32 to index
    %c0_21 = arith.constant 0 : index
    %c0_22 = arith.constant 0 : index
    %56 = vector.load %arg4[%55, %c0_21, %c0_22] : memref<4x1x128xf32, #tpu.memory_space<vmem>>, vector<1x1x128xf32>
    %57 = vector.shape_cast %56 : vector<1x1x128xf32> to vector<1x128xf32>
    %58 = vector.broadcast %57 : vector<1x128xf32> to vector<16x128xf32>
    %59 = arith.addf %54, %58 : vector<16x128xf32>
    %60 = math.tanh %59 : vector<16x128xf32>
    %61 = arith.index_cast %c1_i32 : i32 to index
    %c0_23 = arith.constant 0 : index
    %c0_24 = arith.constant 0 : index
    %62 = vector.load %arg5[%61, %c0_23, %c0_24] : memref<4x128x256xf32, #tpu.memory_space<vmem>>, vector<1x128x256xf32>
    %63 = vector.shape_cast %62 : vector<1x128x256xf32> to vector<128x256xf32>
    %cst_25 = arith.constant dense<0.000000e+00> : vector<16x256xf32>
    %64 = tpu.matmul %60, %63, %cst_25 {dimension_numbers = #tpu.dot_dimension_numbers<[1], [0], [0], [1], [0, 0, 1, 1], [], []>} : vector<16x128xf32>, vector<128x256xf32>, vector<16x256xf32> -> vector<16x256xf32>
    %65 = arith.index_cast %c1_i32 : i32 to index
    %c0_26 = arith.constant 0 : index
    %c0_27 = arith.constant 0 : index
    %66 = vector.load %arg6[%65, %c0_26, %c0_27] : memref<4x1x256xf32, #tpu.memory_space<vmem>>, vector<1x1x256xf32>
    %67 = vector.shape_cast %66 : vector<1x1x256xf32> to vector<1x256xf32>
    %68 = vector.broadcast %67 : vector<1x256xf32> to vector<16x256xf32>
    %69 = arith.addf %64, %68 : vector<16x256xf32>
    %70 = vector.extract_strided_slice %69 {offsets = [0, 0], sizes = [16, 128], strides = [1, 1]} : vector<16x256xf32> to vector<16x128xf32>
    %71 = math.tanh %70 : vector<16x128xf32>
    %72 = vector.extract_strided_slice %69 {offsets = [0, 128], sizes = [16, 128], strides = [1, 1]} : vector<16x256xf32> to vector<16x128xf32>
    %73 = vector.broadcast %46 : vector<1x128xf32> to vector<16x128xf32>
    %74 = arith.mulf %73, %38 : vector<16x128xf32>
    %75 = math.exp %71 : vector<16x128xf32>
    %76 = arith.mulf %38, %75 : vector<16x128xf32>
    %77 = arith.addf %76, %72 : vector<16x128xf32>
    %78 = vector.broadcast %48 : vector<1x128xf32> to vector<16x128xf32>
    %79 = arith.mulf %78, %77 : vector<16x128xf32>
    %80 = arith.addf %74, %79 : vector<16x128xf32>
    %81 = vector.broadcast %48 : vector<1x128xf32> to vector<16x128xf32>
    %82 = arith.mulf %81, %71 : vector<16x128xf32>
    %cst_28 = arith.constant dense<0.000000e+00> : vector<16xf32>
    %83 = vector.multi_reduction <add>, %82, %cst_28 [1] : vector<16x128xf32> to vector<16xf32>
    %84 = vector.shape_cast %83 : vector<16xf32> to vector<16x1xf32>
    %85 = arith.addf %43, %84 : vector<16x1xf32>
    %c2_i32 = arith.constant 2 : i32
    %86 = arith.index_cast %c2_i32 : i32 to index
    %c0_29 = arith.constant 0 : index
    %c0_30 = arith.constant 0 : index
    %87 = vector.load %arg2[%86, %c0_29, %c0_30] : memref<4x1x128xf32, #tpu.memory_space<vmem>>, vector<1x1x128xf32>
    %88 = vector.shape_cast %87 : vector<1x1x128xf32> to vector<1x128xf32>
    %cst_31 = arith.constant 1.000000e+00 : f32
    %89 = vector.broadcast %cst_31 : f32 to vector<1x128xf32>
    %90 = arith.subf %89, %88 : vector<1x128xf32>
    %91 = vector.broadcast %88 : vector<1x128xf32> to vector<16x128xf32>
    %92 = arith.mulf %80, %91 : vector<16x128xf32>
    %93 = arith.index_cast %c2_i32 : i32 to index
    %c0_32 = arith.constant 0 : index
    %c0_33 = arith.constant 0 : index
    %94 = vector.load %arg3[%93, %c0_32, %c0_33] : memref<4x128x128xf32, #tpu.memory_space<vmem>>, vector<1x128x128xf32>
    %95 = vector.shape_cast %94 : vector<1x128x128xf32> to vector<128x128xf32>
    %cst_34 = arith.constant dense<0.000000e+00> : vector<16x128xf32>
    %96 = tpu.matmul %92, %95, %cst_34 {dimension_numbers = #tpu.dot_dimension_numbers<[1], [0], [0], [1], [0, 0, 1, 1], [], []>} : vector<16x128xf32>, vector<128x128xf32>, vector<16x128xf32> -> vector<16x128xf32>
    %97 = arith.index_cast %c2_i32 : i32 to index
    %c0_35 = arith.constant 0 : index
    %c0_36 = arith.constant 0 : index
    %98 = vector.load %arg4[%97, %c0_35, %c0_36] : memref<4x1x128xf32, #tpu.memory_space<vmem>>, vector<1x1x128xf32>
    %99 = vector.shape_cast %98 : vector<1x1x128xf32> to vector<1x128xf32>
    %100 = vector.broadcast %99 : vector<1x128xf32> to vector<16x128xf32>
    %101 = arith.addf %96, %100 : vector<16x128xf32>
    %102 = math.tanh %101 : vector<16x128xf32>
    %103 = arith.index_cast %c2_i32 : i32 to index
    %c0_37 = arith.constant 0 : index
    %c0_38 = arith.constant 0 : index
    %104 = vector.load %arg5[%103, %c0_37, %c0_38] : memref<4x128x256xf32, #tpu.memory_space<vmem>>, vector<1x128x256xf32>
    %105 = vector.shape_cast %104 : vector<1x128x256xf32> to vector<128x256xf32>
    %cst_39 = arith.constant dense<0.000000e+00> : vector<16x256xf32>
    %106 = tpu.matmul %102, %105, %cst_39 {dimension_numbers = #tpu.dot_dimension_numbers<[1], [0], [0], [1], [0, 0, 1, 1], [], []>} : vector<16x128xf32>, vector<128x256xf32>, vector<16x256xf32> -> vector<16x256xf32>
    %107 = arith.index_cast %c2_i32 : i32 to index
    %c0_40 = arith.constant 0 : index
    %c0_41 = arith.constant 0 : index
    %108 = vector.load %arg6[%107, %c0_40, %c0_41] : memref<4x1x256xf32, #tpu.memory_space<vmem>>, vector<1x1x256xf32>
    %109 = vector.shape_cast %108 : vector<1x1x256xf32> to vector<1x256xf32>
    %110 = vector.broadcast %109 : vector<1x256xf32> to vector<16x256xf32>
    %111 = arith.addf %106, %110 : vector<16x256xf32>
    %112 = vector.extract_strided_slice %111 {offsets = [0, 0], sizes = [16, 128], strides = [1, 1]} : vector<16x256xf32> to vector<16x128xf32>
    %113 = math.tanh %112 : vector<16x128xf32>
    %114 = vector.extract_strided_slice %111 {offsets = [0, 128], sizes = [16, 128], strides = [1, 1]} : vector<16x256xf32> to vector<16x128xf32>
    %115 = vector.broadcast %88 : vector<1x128xf32> to vector<16x128xf32>
    %116 = arith.mulf %115, %80 : vector<16x128xf32>
    %117 = math.exp %113 : vector<16x128xf32>
    %118 = arith.mulf %80, %117 : vector<16x128xf32>
    %119 = arith.addf %118, %114 : vector<16x128xf32>
    %120 = vector.broadcast %90 : vector<1x128xf32> to vector<16x128xf32>
    %121 = arith.mulf %120, %119 : vector<16x128xf32>
    %122 = arith.addf %116, %121 : vector<16x128xf32>
    %123 = vector.broadcast %90 : vector<1x128xf32> to vector<16x128xf32>
    %124 = arith.mulf %123, %113 : vector<16x128xf32>
    %cst_42 = arith.constant dense<0.000000e+00> : vector<16xf32>
    %125 = vector.multi_reduction <add>, %124, %cst_42 [1] : vector<16x128xf32> to vector<16xf32>
    %126 = vector.shape_cast %125 : vector<16xf32> to vector<16x1xf32>
    %127 = arith.addf %85, %126 : vector<16x1xf32>
    %c3_i32 = arith.constant 3 : i32
    %128 = arith.index_cast %c3_i32 : i32 to index
    %c0_43 = arith.constant 0 : index
    %c0_44 = arith.constant 0 : index
    %129 = vector.load %arg2[%128, %c0_43, %c0_44] : memref<4x1x128xf32, #tpu.memory_space<vmem>>, vector<1x1x128xf32>
    %130 = vector.shape_cast %129 : vector<1x1x128xf32> to vector<1x128xf32>
    %cst_45 = arith.constant 1.000000e+00 : f32
    %131 = vector.broadcast %cst_45 : f32 to vector<1x128xf32>
    %132 = arith.subf %131, %130 : vector<1x128xf32>
    %133 = vector.broadcast %130 : vector<1x128xf32> to vector<16x128xf32>
    %134 = arith.mulf %122, %133 : vector<16x128xf32>
    %135 = arith.index_cast %c3_i32 : i32 to index
    %c0_46 = arith.constant 0 : index
    %c0_47 = arith.constant 0 : index
    %136 = vector.load %arg3[%135, %c0_46, %c0_47] : memref<4x128x128xf32, #tpu.memory_space<vmem>>, vector<1x128x128xf32>
    %137 = vector.shape_cast %136 : vector<1x128x128xf32> to vector<128x128xf32>
    %cst_48 = arith.constant dense<0.000000e+00> : vector<16x128xf32>
    %138 = tpu.matmul %134, %137, %cst_48 {dimension_numbers = #tpu.dot_dimension_numbers<[1], [0], [0], [1], [0, 0, 1, 1], [], []>} : vector<16x128xf32>, vector<128x128xf32>, vector<16x128xf32> -> vector<16x128xf32>
    %139 = arith.index_cast %c3_i32 : i32 to index
    %c0_49 = arith.constant 0 : index
    %c0_50 = arith.constant 0 : index
    %140 = vector.load %arg4[%139, %c0_49, %c0_50] : memref<4x1x128xf32, #tpu.memory_space<vmem>>, vector<1x1x128xf32>
    %141 = vector.shape_cast %140 : vector<1x1x128xf32> to vector<1x128xf32>
    %142 = vector.broadcast %141 : vector<1x128xf32> to vector<16x128xf32>
    %143 = arith.addf %138, %142 : vector<16x128xf32>
    %144 = math.tanh %143 : vector<16x128xf32>
    %145 = arith.index_cast %c3_i32 : i32 to index
    %c0_51 = arith.constant 0 : index
    %c0_52 = arith.constant 0 : index
    %146 = vector.load %arg5[%145, %c0_51, %c0_52] : memref<4x128x256xf32, #tpu.memory_space<vmem>>, vector<1x128x256xf32>
    %147 = vector.shape_cast %146 : vector<1x128x256xf32> to vector<128x256xf32>
    %cst_53 = arith.constant dense<0.000000e+00> : vector<16x256xf32>
    %148 = tpu.matmul %144, %147, %cst_53 {dimension_numbers = #tpu.dot_dimension_numbers<[1], [0], [0], [1], [0, 0, 1, 1], [], []>} : vector<16x128xf32>, vector<128x256xf32>, vector<16x256xf32> -> vector<16x256xf32>
    %149 = arith.index_cast %c3_i32 : i32 to index
    %c0_54 = arith.constant 0 : index
    %c0_55 = arith.constant 0 : index
    %150 = vector.load %arg6[%149, %c0_54, %c0_55] : memref<4x1x256xf32, #tpu.memory_space<vmem>>, vector<1x1x256xf32>
    %151 = vector.shape_cast %150 : vector<1x1x256xf32> to vector<1x256xf32>
    %152 = vector.broadcast %151 : vector<1x256xf32> to vector<16x256xf32>
    %153 = arith.addf %148, %152 : vector<16x256xf32>
    %154 = vector.extract_strided_slice %153 {offsets = [0, 0], sizes = [16, 128], strides = [1, 1]} : vector<16x256xf32> to vector<16x128xf32>
    %155 = math.tanh %154 : vector<16x128xf32>
    %156 = vector.extract_strided_slice %153 {offsets = [0, 128], sizes = [16, 128], strides = [1, 1]} : vector<16x256xf32> to vector<16x128xf32>
    %157 = vector.broadcast %130 : vector<1x128xf32> to vector<16x128xf32>
    %158 = arith.mulf %157, %122 : vector<16x128xf32>
    %159 = math.exp %155 : vector<16x128xf32>
    %160 = arith.mulf %122, %159 : vector<16x128xf32>
    %161 = arith.addf %160, %156 : vector<16x128xf32>
    %162 = vector.broadcast %132 : vector<1x128xf32> to vector<16x128xf32>
    %163 = arith.mulf %162, %161 : vector<16x128xf32>
    %164 = arith.addf %158, %163 : vector<16x128xf32>
    %165 = vector.broadcast %132 : vector<1x128xf32> to vector<16x128xf32>
    %166 = arith.mulf %165, %155 : vector<16x128xf32>
    %cst_56 = arith.constant dense<0.000000e+00> : vector<16xf32>
    %167 = vector.multi_reduction <add>, %166, %cst_56 [1] : vector<16x128xf32> to vector<16xf32>
    %168 = vector.shape_cast %167 : vector<16xf32> to vector<16x1xf32>
    %169 = arith.addf %127, %168 : vector<16x1xf32>
    %c4_i32 = arith.constant 4 : i32
    %c0_57 = arith.constant 0 : index
    %c0_58 = arith.constant 0 : index
    %170 = vector.load %arg7[%c0_57, %c0_58] : memref<16x128xf32, #tpu.memory_space<vmem>>, vector<16x128xf32>
    tpu.vector_store %arg7[%c0_57, %c0_58], %164 {strides = array<i32>} : memref<16x128xf32, #tpu.memory_space<vmem>>, vector<16x128xf32>,
    %c0_59 = arith.constant 0 : index
    %c0_60 = arith.constant 0 : index
    %171 = vector.load %arg8[%c0_59, %c0_60] : memref<16x1xf32, #tpu.memory_space<vmem>>, vector<16x1xf32>
    tpu.vector_store %arg8[%c0_59, %c0_60], %169 {strides = array<i32>} : memref<16x1xf32, #tpu.memory_space<vmem>>, vector<16x1xf32>,
    return
  }
  func.func @transform_0(%arg0: i32) -> (i32, i32) {
    %c0_i32 = arith.constant 0 : i32
    %c0_i32_0 = arith.constant 0 : i32
    return %arg0, %c0_i32 : i32, i32
  }
  func.func @transform_1(%arg0: i32) -> (i32, i32, i32) {
    %c0_i32 = arith.constant 0 : i32
    %c0_i32_0 = arith.constant 0 : i32
    %c0_i32_1 = arith.constant 0 : i32
    %c0_i32_2 = arith.constant 0 : i32
    return %c0_i32, %c0_i32_0, %c0_i32_1 : i32, i32, i32
  }
  func.func @transform_2(%arg0: i32) -> (i32, i32, i32) {
    %c0_i32 = arith.constant 0 : i32
    %c0_i32_0 = arith.constant 0 : i32
    %c0_i32_1 = arith.constant 0 : i32
    %c0_i32_2 = arith.constant 0 : i32
    return %c0_i32, %c0_i32_0, %c0_i32_1 : i32, i32, i32
  }
  func.func @transform_3(%arg0: i32) -> (i32, i32, i32) {
    %c0_i32 = arith.constant 0 : i32
    %c0_i32_0 = arith.constant 0 : i32
    %c0_i32_1 = arith.constant 0 : i32
    %c0_i32_2 = arith.constant 0 : i32
    return %c0_i32, %c0_i32_0, %c0_i32_1 : i32, i32, i32
  }
  func.func @transform_4(%arg0: i32) -> (i32, i32, i32) {
    %c0_i32 = arith.constant 0 : i32
    %c0_i32_0 = arith.constant 0 : i32
    %c0_i32_1 = arith.constant 0 : i32
    %c0_i32_2 = arith.constant 0 : i32
    return %c0_i32, %c0_i32_0, %c0_i32_1 : i32, i32, i32
  }
  func.func @transform_5(%arg0: i32) -> (i32, i32, i32) {
    %c0_i32 = arith.constant 0 : i32
    %c0_i32_0 = arith.constant 0 : i32
    %c0_i32_1 = arith.constant 0 : i32
    %c0_i32_2 = arith.constant 0 : i32
    return %c0_i32, %c0_i32_0, %c0_i32_1 : i32, i32, i32
  }
  func.func @transform_6(%arg0: i32) -> (i32, i32) {
    %c0_i32 = arith.constant 0 : i32
    %c0_i32_0 = arith.constant 0 : i32
    return %arg0, %c0_i32 : i32, i32
  }
  func.func @transform_7(%arg0: i32) -> (i32, i32) {
    %c0_i32 = arith.constant 0 : i32
    %c0_i32_0 = arith.constant 0 : i32
    return %arg0, %c0_i32 : i32, i32
  }
}

</mosaic_0001>

<llo_original>
// kernel: tpu_custom_call.1
$region0: #{tpu_custom_call.1}
  #allocation0 [shape = 'u32[]', space=smem, size = 0x4, offset = 0x4, fixed_abs, tag = 'smem constant byte address 0x4 - core index']
  #allocation1 [shape = 'u32[144,128]{1,0:T(1,128)}', space=vmem, size = 0x12000, scoped, tag = 'internal scratch']
  %s0 = inlined_call_operand.hbm [shape: f32[32,128], index: 0, kind: input, shape index: {}]
  %s1 = inlined_call_operand.hbm [shape: f32[4,1,128], index: 1, kind: input, shape index: {}]
  %s2 = inlined_call_operand.hbm [shape: f32[4,128,128], index: 2, kind: input, shape index: {}]
  %s3 = inlined_call_operand.vmem [shape: f32[4,1,128], index: 3, kind: input, shape index: {}]
  %s4 = inlined_call_operand.hbm [shape: f32[4,128,256], index: 4, kind: input, shape index: {}]
  %s5 = inlined_call_operand.vmem [shape: f32[4,1,256], index: 5, kind: input, shape index: {}]
  %s6 = inlined_call_operand.hbm [shape: f32[32,128], index: 6, kind: output, shape index: {0}]
  %s7 = inlined_call_operand.vmem [shape: f32[32,1], index: 7, kind: output, shape index: {1}]
  %8 = xla_tuple %s6, %s7
  %s9 = sld [smem:[#allocation0]]
  $region81: #{tpu_custom_call.1} parent=0
    _
  %s11 = ssub.s32 1, %s9
  %s12 = scalar_select 0, %s11, %s9
  $region1: #{tpu_custom_call.1} parent=0
    #allocation2 [shape = 'u8[16384]{0}', space=vmem, size = 0x4000, scoped, tag = 'input window, operand 0']
    #allocation3 [shape = 's32[2]{0}', space=sflag, size = 0x8, scoped, tag = 'scoped memory for tpu_custom_call.1']
    #allocation4 [shape = 's32[2]{0}', space=sflag, size = 0x8, scoped, tag = 'scoped memory for tpu_custom_call.1']
    #allocation5 [shape = 'u8[2048]{0}', space=vmem, size = 0x800, scoped, tag = 'input window, operand 1, single buffered']
    #allocation6 [shape = 's32[1]{0}', space=sflag, size = 0x4, scoped, tag = 'scoped memory for tpu_custom_call.1']
    #allocation7 [shape = 'u8[262144]{0}', space=vmem, size = 0x40000, scoped, tag = 'input window, operand 2, single buffered']
    #allocation8 [shape = 'u8[524288]{0}', space=vmem, size = 0x80000, scoped, tag = 'input window, operand 4, single buffered']
    #allocation9 [shape = 's32[1]{0}', space=sflag, size = 0x4, scoped, tag = 'scoped memory for tpu_custom_call.1']
    #allocation10 [shape = 'u8[16384]{0}', space=vmem, size = 0x4000, scoped, tag = 'output window, operand 0']
    %13 = vsyncpa [#allocation3], 0
    %s14 = scalar_lea.sflag [#allocation3], 1
    %15 = vsyncpa %s14, 0
    %16 = vsyncpa [#allocation6], 0
    %17 = vsyncpa [#allocation9], 0
    %18 = vsyncpa [#allocation4], 0
    %s19 = scalar_lea.sflag [#allocation4], 1
    %20 = vsyncpa %s19, 0
    loop: start=0, step=1, limit=4
    $region2: #{tpu_custom_call.1} parent=1 // loop_pre_header
      _
    $region3: #{tpu_custom_call.1} parent=1 // loop_header
      %s22 = sphi 0, %s26
      %p23 = scmp.ge.s32.totalorder %s22, 4
      %s32 = sphi 0, %s34
      %s35 = sphi 0, %s32
      %s36 = sphi 0, %s35
      %s52 = sphi 0, %s36
      %s56 = sphi 0, %s56
      %s58 = sphi 0, %s56
      %s59 = sphi 0, %s58
      %s73 = sphi 0, %s59
      %s77 = sphi 0, %s77
      %s79 = sphi 0, %s77
      %s80 = sphi 0, %s79
      %s94 = sphi 0, %s80
      %s98 = sphi 0, %s98
      %s100 = sphi 0, %s98
      %s101 = sphi 0, %s100
      %s115 = sphi 0, %s101
      %s119 = sphi 0, %s119
      %s121 = sphi 0, %s119
      %s122 = sphi 0, %s121
      %s136 = sphi 0, %s122
      %s140 = sphi 0, %s140
      %s142 = sphi 0, %s140
      %s143 = sphi 0, %s142
      %s157 = sphi 0, %s143
      %s163 = sphi 0, %s165
      %s166 = sphi 0, %s163
      %s167 = sphi 0, %s166
      %s183 = sphi 0, %s167
      %s189 = sphi 0, %s191
      %s192 = sphi 0, %s189
      %s193 = sphi 0, %s192
      %s209 = sphi 0, %s193
    $region4: #{tpu_custom_call.1} parent=1 // loop_header_branch
      %25 = sbr.rel (%p23) target = $region8
    $region5: #{tpu_custom_call.1} parent=1 // loop_body
      %s27 = ssub.s32 %s22, 1
      %s28 = ssub.s32 %s22, 2
      %s29 = sadd.s32 %s22, 1
      %s30 = ssub.s32 %s22, %s29
      %p31 = scmp.eq.s32.totalorder %s30, 0
      %s33 = sadd.s32 %s32, 1
      %s34 = scalar_select %p31, %s32, %s33
      %p37 = pneg %p31
      %p38 = scmp.eq.s32.totalorder %s22, 1
      %p39 = por %p37, %p38
      %p40 = scmp.ne.s32.totalorder %s32, %s35
      %p41 = scmp.eq.s32.totalorder %s22, 0
      %p42 = por %p40, %p41
      %p43 = scmp.ne.s32.totalorder %s32, %s35
      %p44 = scmp.eq.s32.totalorder %s27, 1
      %p45 = por %p43, %p44
      %p46 = scmp.ne.s32.totalorder %s35, %s36
      %p47 = scmp.eq.s32.totalorder %s27, 0
      %p48 = por %p46, %p47
      %p49 = scmp.ne.s32.totalorder %s35, %s36
      %p50 = scmp.eq.s32.totalorder %s28, 1
      %p51 = por %p49, %p50
      %p53 = scmp.ne.s32.totalorder %s36, %s52
      %p54 = scmp.eq.s32.totalorder %s28, 0
      %p55 = por %p53, %p54
      %s57 = sadd.s32 %s56, 1
      %p60 = scmp.eq.s32.totalorder %s22, 1
      %p61 = scmp.ne.s32.totalorder %s56, %s58
      %p62 = scmp.eq.s32.totalorder %s22, 0
      %p63 = por %p61, %p62
      %p64 = scmp.ne.s32.totalorder %s56, %s58
      %p65 = scmp.eq.s32.totalorder %s27, 1
      %p66 = por %p64, %p65
      %p67 = scmp.ne.s32.totalorder %s58, %s59
      %p68 = scmp.eq.s32.totalorder %s27, 0
      %p69 = por %p67, %p68
      %p70 = scmp.ne.s32.totalorder %s58, %s59
      %p71 = scmp.eq.s32.totalorder %s28, 1
      %p72 = por %p70, %p71
      %p74 = scmp.ne.s32.totalorder %s59, %s73
      %p75 = scmp.eq.s32.totalorder %s28, 0
      %p76 = por %p74, %p75
      %s78 = sadd.s32 %s77, 1
      %p81 = scmp.eq.s32.totalorder %s22, 1
      %p82 = scmp.ne.s32.totalorder %s77, %s79
      %p83 = scmp.eq.s32.totalorder %s22, 0
      %p84 = por %p82, %p83
      %p85 = scmp.ne.s32.totalorder %s77, %s79
      %p86 = scmp.eq.s32.totalorder %s27, 1
      %p87 = por %p85, %p86
      %p88 = scmp.ne.s32.totalorder %s79, %s80
      %p89 = scmp.eq.s32.totalorder %s27, 0
      %p90 = por %p88, %p89
      %p91 = scmp.ne.s32.totalorder %s79, %s80
      %p92 = scmp.eq.s32.totalorder %s28, 1
      %p93 = por %p91, %p92
      %p95 = scmp.ne.s32.totalorder %s80, %s94
      %p96 = scmp.eq.s32.totalorder %s28, 0
      %p97 = por %p95, %p96
      %s99 = sadd.s32 %s98, 1
      %p102 = scmp.eq.s32.totalorder %s22, 1
      %p103 = scmp.ne.s32.totalorder %s98, %s100
      %p104 = scmp.eq.s32.totalorder %s22, 0
      %p105 = por %p103, %p104
      %p106 = scmp.ne.s32.totalorder %s98, %s100
      %p107 = scmp.eq.s32.totalorder %s27, 1
      %p108 = por %p106, %p107
      %p109 = scmp.ne.s32.totalorder %s100, %s101
      %p110 = scmp.eq.s32.totalorder %s27, 0
      %p111 = por %p109, %p110
      %p112 = scmp.ne.s32.totalorder %s100, %s101
      %p113 = scmp.eq.s32.totalorder %s28, 1
      %p114 = por %p112, %p113
      %p116 = scmp.ne.s32.totalorder %s101, %s115
      %p117 = scmp.eq.s32.totalorder %s28, 0
      %p118 = por %p116, %p117
      %s120 = sadd.s32 %s119, 1
      %p123 = scmp.eq.s32.totalorder %s22, 1
      %p124 = scmp.ne.s32.totalorder %s119, %s121
      %p125 = scmp.eq.s32.totalorder %s22, 0
      %p126 = por %p124, %p125
      %p127 = scmp.ne.s32.totalorder %s119, %s121
      %p128 = scmp.eq.s32.totalorder %s27, 1
      %p129 = por %p127, %p128
      %p130 = scmp.ne.s32.totalorder %s121, %s122
      %p131 = scmp.eq.s32.totalorder %s27, 0
      %p132 = por %p130, %p131
      %p133 = scmp.ne.s32.totalorder %s121, %s122
      %p134 = scmp.eq.s32.totalorder %s28, 1
      %p135 = por %p133, %p134
      %p137 = scmp.ne.s32.totalorder %s122, %s136
      %p138 = scmp.eq.s32.totalorder %s28, 0
      %p139 = por %p137, %p138
      %s141 = sadd.s32 %s140, 1
      %p144 = scmp.eq.s32.totalorder %s22, 1
      %p145 = scmp.ne.s32.totalorder %s140, %s142
      %p146 = scmp.eq.s32.totalorder %s22, 0
      %p147 = por %p145, %p146
      %p148 = scmp.ne.s32.totalorder %s140, %s142
      %p149 = scmp.eq.s32.totalorder %s27, 1
      %p150 = por %p148, %p149
      %p151 = scmp.ne.s32.totalorder %s142, %s143
      %p152 = scmp.eq.s32.totalorder %s27, 0
      %p153 = por %p151, %p152
      %p154 = scmp.ne.s32.totalorder %s142, %s143
      %p155 = scmp.eq.s32.totalorder %s28, 1
      %p156 = por %p154, %p155
      %p158 = scmp.ne.s32.totalorder %s143, %s157
      %p159 = scmp.eq.s32.totalorder %s28, 0
      %p160 = por %p158, %p159
      %s161 = ssub.s32 %s22, %s29
      %p162 = scmp.eq.s32.totalorder %s161, 0
      %s164 = sadd.s32 %s163, 1
      %s165 = scalar_select %p162, %s163, %s164
      %p168 = pneg %p162
      %p169 = scmp.eq.s32.totalorder %s22, 1
      %p170 = por %p168, %p169
      %p171 = scmp.ne.s32.totalorder %s163, %s166
      %p172 = scmp.eq.s32.totalorder %s22, 0
      %p173 = por %p171, %p172
      %p174 = scmp.ne.s32.totalorder %s163, %s166
      %p175 = scmp.eq.s32.totalorder %s27, 1
      %p176 = por %p174, %p175
      %p177 = scmp.ne.s32.totalorder %s166, %s167
      %p178 = scmp.eq.s32.totalorder %s27, 0
      %p179 = por %p177, %p178
      %p180 = scmp.ne.s32.totalorder %s166, %s167
      %p181 = scmp.eq.s32.totalorder %s28, 1
      %p182 = por %p180, %p181
      %p184 = scmp.ne.s32.totalorder %s167, %s183
      %p185 = scmp.eq.s32.totalorder %s28, 0
      %p186 = por %p184, %p185
      %s187 = ssub.s32 %s22, %s29
      %p188 = scmp.eq.s32.totalorder %s187, 0
      %s190 = sadd.s32 %s189, 1
      %s191 = scalar_select %p188, %s189, %s190
      %p194 = pneg %p188
      %p195 = scmp.eq.s32.totalorder %s22, 1
      %p196 = por %p194, %p195
      %p197 = scmp.ne.s32.totalorder %s189, %s192
      %p198 = scmp.eq.s32.totalorder %s22, 0
      %p199 = por %p197, %p198
      %p200 = scmp.ne.s32.totalorder %s189, %s192
      %p201 = scmp.eq.s32.totalorder %s27, 1
      %p202 = por %p200, %p201
      %p203 = scmp.ne.s32.totalorder %s192, %s193
      %p204 = scmp.eq.s32.totalorder %s27, 0
      %p205 = por %p203, %p204
      %p206 = scmp.ne.s32.totalorder %s192, %s193
      %p207 = scmp.eq.s32.totalorder %s28, 1
      %p208 = por %p206, %p207
      %p210 = scmp.ne.s32.totalorder %s193, %s209
      %p211 = scmp.eq.s32.totalorder %s28, 0
      %p212 = por %p210, %p211
      %p213 = scmp.le.s32.totalorder 1, %s22
      %p214 = scmp.lt.s32.totalorder %s22, 3
      %p215 = pnand %p213, %p214
      %p216 = pneg %p215
      // Predicated region
      $region9: #{tpu_custom_call.1} parent=5 // pred_check
        _
      $region10: #{tpu_custom_call.1} parent=5 // pred_check_branch
        %218 = sbr.rel (%p215) target = $region12
      $region11: #{tpu_custom_call.1} parent=5 // pred_region
        %s219 = ssub.s32 %s22, 1
        // Predicated region
        $region13: #{tpu_custom_call.1} parent=11 // pred_check
          %p220 = pneg %p69
        $region14: #{tpu_custom_call.1} parent=11 // pred_check_branch
          %222 = sbr.rel (%p220) target = $region16
        $region15: #{tpu_custom_call.1} parent=11 // pred_region
          %s224 = ssub.s32 64, 64
          %225 = vsyncadd [#allocation6], %s224
          %s226 = sshll.u32 [#allocation5], 4
          %s227 = int_to_ptr.vmem [resolvable:$true] %s226
          %232 = dma.hbm_to_vmem [thread:$0]  %s1, 64, %s227, [#allocation6], 16, 16, 1
        $region16: #{tpu_custom_call.1} parent=11 // pred_fallthru
          _
        // Predicated region
        $region17: #{tpu_custom_call.1} parent=11 // pred_check
          %p233 = pneg %p90
        $region18: #{tpu_custom_call.1} parent=11 // pred_check_branch
          %235 = sbr.rel (%p233) target = $region20
        $region19: #{tpu_custom_call.1} parent=11 // pred_region
          %s237 = ssub.s32 8192, 8192
          %238 = vsyncadd [#allocation6], %s237
          %s239 = sshll.u32 [#allocation7], 4
          %s240 = int_to_ptr.vmem [resolvable:$true] %s239
          %245 = dma.hbm_to_vmem [thread:$0]  %s2, 8192, %s240, [#allocation6], 128, 128, 8
        $region20: #{tpu_custom_call.1} parent=11 // pred_fallthru
          _
        // Predicated region
        $region21: #{tpu_custom_call.1} parent=11 // pred_check
          %p246 = pneg %p111
        $region22: #{tpu_custom_call.1} parent=11 // pred_check_branch
          %248 = sbr.rel (%p246) target = $region24
        $region23: #{tpu_custom_call.1} parent=11 // pred_region
          _
        $region24: #{tpu_custom_call.1} parent=11 // pred_fallthru
          _
        // Predicated region
        $region25: #{tpu_custom_call.1} parent=11 // pred_check
          %p249 = pneg %p132
        $region26: #{tpu_custom_call.1} parent=11 // pred_check_branch
          %251 = sbr.rel (%p249) target = $region28
        $region27: #{tpu_custom_call.1} parent=11 // pred_region
          %s253 = ssub.s32 16384, 16384
          %254 = vsyncadd [#allocation9], %s253
          %s255 = sshll.u32 [#allocation8], 4
          %s256 = int_to_ptr.vmem [resolvable:$true] %s255
          %261 = dma.hbm_to_vmem [thread:$0]  %s4, 16384, %s256, [#allocation9], 256, 256, 16
        $region28: #{tpu_custom_call.1} parent=11 // pred_fallthru
          _
        // Predicated region
        $region29: #{tpu_custom_call.1} parent=11 // pred_check
          %p262 = pneg %p153
        $region30: #{tpu_custom_call.1} parent=11 // pred_check_branch
          %264 = sbr.rel (%p262) target = $region32
        $region31: #{tpu_custom_call.1} parent=11 // pred_region
          _
        $region32: #{tpu_custom_call.1} parent=11 // pred_fallthru
          _
      $region12: #{tpu_custom_call.1} parent=5 // pred_fallthru
        _
      %p265 = scmp.lt.s32.totalorder %s22, 2
      // Predicated region
      $region33: #{tpu_custom_call.1} parent=5 // pred_check
        %p266 = pneg %p265
      $region34: #{tpu_custom_call.1} parent=5 // pred_check_branch
        %268 = sbr.rel (%p266) target = $region36
      $region35: #{tpu_custom_call.1} parent=5 // pred_region
        // Predicated region
        $region37: #{tpu_custom_call.1} parent=35 // pred_check
          %p269 = pneg %p42
        $region38: #{tpu_custom_call.1} parent=35 // pred_check_branch
          %271 = sbr.rel (%p269) target = $region40
        $region39: #{tpu_custom_call.1} parent=35 // pred_region
          %s272 = sand.u32 %s32, 1
          %s273 = scalar_lea.sflag [#allocation3], %s272
          %s274 = sand.u32 %s32, 1
          %s275 = smul.addr %s274, 16
          %s276 = scalar_lea.vmem [#allocation2], %s275
          %s277 = smul.u32 2, %s22
          %s279 = ssub.s32 256, 256
          %280 = vsyncadd %s273, %s279
          %s281 = smul.addr %s277, 128
          %s282 = scalar_lea.hbm %s0, %s281
          %s283 = sshll.u32 %s276, 4
          %s284 = int_to_ptr.vmem [resolvable:$true] %s283
          %289 = dma.hbm_to_vmem [thread:$0]  %s282, 256, %s284, %s273, 128, 128, 8
        $region40: #{tpu_custom_call.1} parent=35 // pred_fallthru
          _
      $region36: #{tpu_custom_call.1} parent=5 // pred_fallthru
        _
      %p290 = scmp.le.s32.totalorder 1, %s22
      %p291 = scmp.lt.s32.totalorder %s22, 3
      %p292 = pnand %p290, %p291
      %p293 = pneg %p292
      // Predicated region
      $region41: #{tpu_custom_call.1} parent=5 // pred_check
        _
      $region42: #{tpu_custom_call.1} parent=5 // pred_check_branch
        %295 = sbr.rel (%p292) target = $region44
      $region43: #{tpu_custom_call.1} parent=5 // pred_region
        %s296 = ssub.s32 %s22, 1
        %s297 = sand.u32 %s35, 1
        %s298 = scalar_lea.sflag [#allocation3], %s297
        %s299 = sand.u32 %s35, 1
        %s300 = smul.addr %s299, 16
        %s301 = scalar_lea.vmem [#allocation2], %s300
        // Predicated region
        $region45: #{tpu_custom_call.1} parent=43 // pred_check
          %p302 = pneg %p48
        $region46: #{tpu_custom_call.1} parent=43 // pred_check_branch
          %304 = sbr.rel (%p302) target = $region48
        $region47: #{tpu_custom_call.1} parent=43 // pred_region
          %305 = dma.done %s298, 256
        $region48: #{tpu_custom_call.1} parent=43 // pred_fallthru
          _
        // Predicated region
        $region49: #{tpu_custom_call.1} parent=43 // pred_check
          %p306 = pneg %p69
        $region50: #{tpu_custom_call.1} parent=43 // pred_check_branch
          %308 = sbr.rel (%p306) target = $region52
        $region51: #{tpu_custom_call.1} parent=43 // pred_region
          %309 = dma.done [#allocation6], 64
        $region52: #{tpu_custom_call.1} parent=43 // pred_fallthru
          _
        // Predicated region
        $region53: #{tpu_custom_call.1} parent=43 // pred_check
          %p310 = pneg %p90
        $region54: #{tpu_custom_call.1} parent=43 // pred_check_branch
          %312 = sbr.rel (%p310) target = $region56
        $region55: #{tpu_custom_call.1} parent=43 // pred_region
          %313 = dma.done [#allocation6], 8192
        $region56: #{tpu_custom_call.1} parent=43 // pred_fallthru
          _
        // Predicated region
        $region57: #{tpu_custom_call.1} parent=43 // pred_check
          %p314 = pneg %p132
        $region58: #{tpu_custom_call.1} parent=43 // pred_check_branch
          %316 = sbr.rel (%p314) target = $region60
        $region59: #{tpu_custom_call.1} parent=43 // pred_region
          %317 = dma.done [#allocation9], 16384
        $region60: #{tpu_custom_call.1} parent=43 // pred_fallthru
          _
        %s318 = sand.u32 %s35, 1
        %s319 = scalar_lea.sflag [#allocation3], %s318
        %s320 = sand.u32 %s35, 1
        %s321 = smul.addr %s320, 16
        %s322 = scalar_lea.vmem [#allocation2], %s321
        %p323 = pneg %p48
        %p324 = pneg %p45
        %p325 = pneg %p69
        %p326 = pneg %p66
        %p327 = pneg %p90
        %p328 = pneg %p87
        %p329 = pneg %p111
        %p330 = pneg %p108
        %p331 = pneg %p132
        %p332 = pneg %p129
        %p333 = pneg %p153
        %p334 = pneg %p150
        %p335 = pneg %p179
        %p336 = pneg %p176
        %s337 = sand.u32 %s166, 1
        %s338 = scalar_lea.sflag [#allocation4], %s337
        %s339 = sand.u32 %s166, 1
        %s340 = smul.addr %s339, 16
        %s341 = scalar_lea.vmem [#allocation10], %s340
        %p342 = pneg %p205
        %p343 = pneg %p202
        %s344 = smul.u32 2, %s27
        %p345 = scmp.lt.s32.totalorder %s344, 3
        %s346 = scalar_select %p345, %s344, 3
        %s347 = smul.addr %s346, 8
        %s348 = scalar_lea.vmem %s7, %s347
        %s349 = smul.u32 2, %s27
        %s350 = smul.u32 2, %s27
        %s351 = smul.u32 2, %s27
        %p352 = scmp.lt.s32.totalorder %s351, 3
        %s353 = scalar_select %p352, %s351, 3
        %s354 = smul.addr %s353, 8
        %s355 = scalar_lea.vmem %s7, %s354
        %s356 = smul.u32 2, %s27
        %v357 = vld [vmem:[%s301] sm:$0xff]
        %v358 = vld [vmem:[%s301 + $0x8] sm:$0xff]
        %v359 = vld [vmem:[#allocation5] sm:$0x1]
        %v360 = vsub.f32 1.0, %v359
        %v362 = vlaneseq
        %v363 = vshrl.u32 %v362, 7
        %v364 = vsub.s32 0, %v363
        %v365 = vrot.slane %v359, %v364
        %v367 = vmul.f32 %v357, %v365
        %v368 = vmul.f32 %v358, %v365
        %v369 = vld [vmem:[#allocation7] sm:$0xff]
        %v370 = vld [vmem:[#allocation7 + $0x8] sm:$0xff]
        %v371 = vld [vmem:[#allocation7 + $0x10] sm:$0xff]
        %v372 = vld [vmem:[#allocation7 + $0x18] sm:$0xff]
        %v373 = vld [vmem:[#allocation7 + $0x20] sm:$0xff]
        %v374 = vld [vmem:[#allocation7 + $0x28] sm:$0xff]
        %v375 = vld [vmem:[#allocation7 + $0x30] sm:$0xff]
        %v376 = vld [vmem:[#allocation7 + $0x38] sm:$0xff]
        %v377 = vld [vmem:[#allocation7 + $0x40] sm:$0xff]
        %v378 = vld [vmem:[#allocation7 + $0x48] sm:$0xff]
        %v379 = vld [vmem:[#allocation7 + $0x50] sm:$0xff]
        %v380 = vld [vmem:[#allocation7 + $0x58] sm:$0xff]
        %v381 = vld [vmem:[#allocation7 + $0x60] sm:$0xff]
        %v382 = vld [vmem:[#allocation7 + $0x68] sm:$0xff]
        %v383 = vld [vmem:[#allocation7 + $0x70] sm:$0xff]
        %v384 = vld [vmem:[#allocation7 + $0x78] sm:$0xff]
        %v385 = vld [vmem:[%s3] sm:$0x1]
        %v387 = vlaneseq
        %v388 = vshrl.u32 %v387, 7
        %v389 = vsub.s32 0, %v388
        %v390 = vrot.slane %v385, %v389
        %392 = vmatprep.subr.mxu0 0.0
        %393 = vmatpush1.msra.mxu0 %v369
        %394 = vmatprep.subr.mxu0 0.0
        %395 = vmatpush1.msra.mxu0 %v370
        %396 = vmatprep.subr.mxu0 0.0
        %397 = vmatpush1.msra.mxu0 %v371
        %398 = vmatprep.subr.mxu0 0.0
        %399 = vmatpush1.msra.mxu0 %v372
        %400 = vmatprep.subr.mxu0 0.0
        %401 = vmatpush1.msra.mxu0 %v373
        %402 = vmatprep.subr.mxu0 0.0
        %403 = vmatpush1.msra.mxu0 %v374
        %404 = vmatprep.subr.mxu0 0.0
        %405 = vmatpush1.msra.mxu0 %v375
        %406 = vmatprep.subr.mxu0 0.0
        %407 = vmatpush1.msra.mxu0 %v376
        %408 = vmatprep.subr.mxu0 0.0
        %409 = vmatpush1.msra.mxu0 %v377
        %410 = vmatprep.subr.mxu0 0.0
        %411 = vmatpush1.msra.mxu0 %v378
        %412 = vmatprep.subr.mxu0 0.0
        %413 = vmatpush1.msra.mxu0 %v379
        %414 = vmatprep.subr.mxu0 0.0
        %415 = vmatpush1.msra.mxu0 %v380
        %416 = vmatprep.subr.mxu0 0.0
        %417 = vmatpush1.msra.mxu0 %v381
        %418 = vmatprep.subr.mxu0 0.0
        %419 = vmatpush1.msra.mxu0 %v382
        %420 = vmatprep.subr.mxu0 0.0
        %421 = vmatpush1.msra.mxu0 %v383
        %422 = vmatprep.subr.mxu0 0.0
        %423 = vmatpush1.msra.mxu0 %v384
        %424 = vmatprep.subr.mxu0 0.0
        %425 = vmatpush1.msra.mxu0 0.0
        %426 = vmatprep.subr.mxu0 0.0
        %427 = vmatpush1.msra.mxu0 0.0
        %428 = vmatprep.subr.mxu0 0.0
        %429 = vmatpush1.msra.mxu0 0.0
        %430 = vmatprep.subr.mxu0 0.0
        %431 = vmatpush1.msra.mxu0 0.0
        %432 = vmatprep.subr.mxu0 0.0
        %433 = vmatpush1.msra.mxu0 0.0
        %434 = vmatprep.subr.mxu0 0.0
        %435 = vmatpush1.msra.mxu0 0.0
        %436 = vmatprep.subr.mxu0 0.0
        %437 = vmatpush1.msra.mxu0 0.0
        %438 = vmatprep.subr.mxu0 0.0
        %439 = vmatpush1.msra.mxu0 0.0
        %440 = vmatprep.subr.mxu0 0.0
        %441 = vmatpush1.msra.mxu0 0.0
        %442 = vmatprep.subr.mxu0 0.0
        %443 = vmatpush1.msra.mxu0 0.0
        %444 = vmatprep.subr.mxu0 0.0
        %445 = vmatpush1.msra.mxu0 0.0
        %446 = vmatprep.subr.mxu0 0.0
        %447 = vmatpush1.msra.mxu0 0.0
        %448 = vmatprep.subr.mxu0 0.0
        %449 = vmatpush1.msra.mxu0 0.0
        %450 = vmatprep.subr.mxu0 0.0
        %451 = vmatpush1.msra.mxu0 0.0
        %452 = vmatprep.subr.mxu0 0.0
        %453 = vmatpush1.msra.mxu0 0.0
        %454 = vmatprep.subr.mxu0 0.0
        %455 = vmatpush1.msra.mxu0 0.0
        %456 = vmatprep.mubr.f32.mxu0 0.0
        %457 = vmatmul.mubr.f32.gmra.mrb[0].mxu0 %v367
        %v458 = vpop.f32.mrb[0].mxu0
        %v459 = vadd.f32 %v390, %v458
        %v460 = vpop.f32.mrb[0].mxu0
        %461 = vmatprep.mubr.f32.mxu0 0.0
        %462 = vmatmul.mubr.f32.gmra.mrb[0].mxu0 %v368
        %v463 = vpop.f32.mrb[0].mxu0
        %v464 = vadd.f32 %v390, %v463
        %v465 = vpop.f32.mrb[0].mxu0
        %466 = vdwg.mxu0
        %v467 = vtanh.pop %v459
        %v468 = vtanh.pop %v464
        %v469 = vld [vmem:[#allocation8] sm:$0xff]
        %v470 = vld [vmem:[#allocation8 + $0x8] sm:$0xff]
        %v471 = vld [vmem:[#allocation8 + $0x10] sm:$0xff]
        %v472 = vld [vmem:[#allocation8 + $0x18] sm:$0xff]
        %v473 = vld [vmem:[#allocation8 + $0x20] sm:$0xff]
        %v474 = vld [vmem:[#allocation8 + $0x28] sm:$0xff]
        %v475 = vld [vmem:[#allocation8 + $0x30] sm:$0xff]
        %v476 = vld [vmem:[#allocation8 + $0x38] sm:$0xff]
        %v477 = vld [vmem:[#allocation8 + $0x40] sm:$0xff]
        %v478 = vld [vmem:[#allocation8 + $0x48] sm:$0xff]
        %v479 = vld [vmem:[#allocation8 + $0x50] sm:$0xff]
        %v480 = vld [vmem:[#allocation8 + $0x58] sm:$0xff]
        %v481 = vld [vmem:[#allocation8 + $0x60] sm:$0xff]
        %v482 = vld [vmem:[#allocation8 + $0x68] sm:$0xff]
        %v483 = vld [vmem:[#allocation8 + $0x70] sm:$0xff]
        %v484 = vld [vmem:[#allocation8 + $0x78] sm:$0xff]
        %v485 = vld [vmem:[#allocation8 + $0x80] sm:$0xff]
        %v486 = vld [vmem:[#allocation8 + $0x88] sm:$0xff]
        %v487 = vld [vmem:[#allocation8 + $0x90] sm:$0xff]
        %v488 = vld [vmem:[#allocation8 + $0x98] sm:$0xff]
        %v489 = vld [vmem:[#allocation8 + $0xa0] sm:$0xff]
        %v490 = vld [vmem:[#allocation8 + $0xa8] sm:$0xff]
        %v491 = vld [vmem:[#allocation8 + $0xb0] sm:$0xff]
        %v492 = vld [vmem:[#allocation8 + $0xb8] sm:$0xff]
        %v493 = vld [vmem:[#allocation8 + $0xc0] sm:$0xff]
        %v494 = vld [vmem:[#allocation8 + $0xc8] sm:$0xff]
        %v495 = vld [vmem:[#allocation8 + $0xd0] sm:$0xff]
        %v496 = vld [vmem:[#allocation8 + $0xd8] sm:$0xff]
        %v497 = vld [vmem:[#allocation8 + $0xe0] sm:$0xff]
        %v498 = vld [vmem:[#allocation8 + $0xe8] sm:$0xff]
        %v499 = vld [vmem:[#allocation8 + $0xf0] sm:$0xff]
        %v500 = vld [vmem:[#allocation8 + $0xf8] sm:$0xff]
        %v501 = vld [vmem:[%s5] sm:$0x3]
        %v503 = vlaneseq
        %v504 = vshrl.u32 %v503, 7
        %v505 = vsub.s32 0, %v504
        %v506 = vrot.slane %v501, %v505
        %v507 = vlaneseq
        %v508 = vshrl.u32 %v507, 7
        %v509 = vsub.s32 1, %v508
        %v510 = vrot.slane %v501, %v509
        %513 = vmatprep.subr.mxu0 %v470
        %514 = vmatpush1.msra.mxu0 %v469
        %515 = vmatprep.subr.mxu0 %v472
        %516 = vmatpush1.msra.mxu0 %v471
        %517 = vmatprep.subr.mxu0 %v474
        %518 = vmatpush1.msra.mxu0 %v473
        %519 = vmatprep.subr.mxu0 %v476
        %520 = vmatpush1.msra.mxu0 %v475
        %521 = vmatprep.subr.mxu0 %v478
        %522 = vmatpush1.msra.mxu0 %v477
        %523 = vmatprep.subr.mxu0 %v480
        %524 = vmatpush1.msra.mxu0 %v479
        %525 = vmatprep.subr.mxu0 %v482
        %526 = vmatpush1.msra.mxu0 %v481
        %527 = vmatprep.subr.mxu0 %v484
        %528 = vmatpush1.msra.mxu0 %v483
        %529 = vmatprep.subr.mxu0 %v486
        %530 = vmatpush1.msra.mxu0 %v485
        %531 = vmatprep.subr.mxu0 %v488
        %532 = vmatpush1.msra.mxu0 %v487
        %533 = vmatprep.subr.mxu0 %v490
        %534 = vmatpush1.msra.mxu0 %v489
        %535 = vmatprep.subr.mxu0 %v492
        %536 = vmatpush1.msra.mxu0 %v491
        %537 = vmatprep.subr.mxu0 %v494
        %538 = vmatpush1.msra.mxu0 %v493
        %539 = vmatprep.subr.mxu0 %v496
        %540 = vmatpush1.msra.mxu0 %v495
        %541 = vmatprep.subr.mxu0 %v498
        %542 = vmatpush1.msra.mxu0 %v497
        %543 = vmatprep.subr.mxu0 %v500
        %544 = vmatpush1.msra.mxu0 %v499
        %545 = vmatprep.subr.mxu0 0.0
        %546 = vmatpush1.msra.mxu0 0.0
        %547 = vmatprep.subr.mxu0 0.0
        %548 = vmatpush1.msra.mxu0 0.0
        %549 = vmatprep.subr.mxu0 0.0
        %550 = vmatpush1.msra.mxu0 0.0
        %551 = vmatprep.subr.mxu0 0.0
        %552 = vmatpush1.msra.mxu0 0.0
        %553 = vmatprep.subr.mxu0 0.0
        %554 = vmatpush1.msra.mxu0 0.0
        %555 = vmatprep.subr.mxu0 0.0
        %556 = vmatpush1.msra.mxu0 0.0
        %557 = vmatprep.subr.mxu0 0.0
        %558 = vmatpush1.msra.mxu0 0.0
        %559 = vmatprep.subr.mxu0 0.0
        %560 = vmatpush1.msra.mxu0 0.0
        %561 = vmatprep.subr.mxu0 0.0
        %562 = vmatpush1.msra.mxu0 0.0
        %563 = vmatprep.subr.mxu0 0.0
        %564 = vmatpush1.msra.mxu0 0.0
        %565 = vmatprep.subr.mxu0 0.0
        %566 = vmatpush1.msra.mxu0 0.0
        %567 = vmatprep.subr.mxu0 0.0
        %568 = vmatpush1.msra.mxu0 0.0
        %569 = vmatprep.subr.mxu0 0.0
        %570 = vmatpush1.msra.mxu0 0.0
        %571 = vmatprep.subr.mxu0 0.0
        %572 = vmatpush1.msra.mxu0 0.0
        %573 = vmatprep.subr.mxu0 0.0
        %574 = vmatpush1.msra.mxu0 0.0
        %575 = vmatprep.subr.mxu0 0.0
        %576 = vmatpush1.msra.mxu0 0.0
        %577 = vmatprep.mubr.f32.mxu0 0.0
        %578 = vmatmul.mubr.f32.gmra.mrb[0].mxu0 %v467
        %v579 = vpop.f32.mrb[0].mxu0
        %v580 = vadd.f32 %v506, %v579
        %v581 = vpop.f32.mrb[0].mxu0
        %v582 = vadd.f32 %v510, %v581
        %583 = vmatprep.mubr.f32.mxu0 0.0
        %584 = vmatmul.mubr.f32.gmra.mrb[0].mxu0 %v468
        %v585 = vpop.f32.mrb[0].mxu0
        %v586 = vadd.f32 %v506, %v585
        %v587 = vpop.f32.mrb[0].mxu0
        %v588 = vadd.f32 %v510, %v587
        %589 = vdwg.mxu0
        %v590 = vtanh.pop %v580
        %v591 = vtanh.pop %v586
        %v592 = vmul.f32 %v590, 1.442695
        %v593 = vpow.pop %v592
        %v594 = vmul.f32 %v591, 1.442695
        %v595 = vpow.pop %v594
        %v596 = vmul.f32 %v357, %v593
        %v597 = vmul.f32 %v358, %v595
        %v598 = vadd.f32 %v596, %v582
        %v599 = vadd.f32 %v597, %v588
        %v601 = vlaneseq
        %v602 = vshrl.u32 %v601, 7
        %v603 = vsub.s32 0, %v602
        %v604 = vrot.slane %v360, %v603
        %v606 = vmul.f32 %v604, %v598
        %v607 = vmul.f32 %v604, %v599
        %v608 = vadd.f32 %v367, %v606
        %v609 = vadd.f32 %v368, %v607
        %v610 = vmul.f32 %v604, %v590
        %v611 = vmul.f32 %v604, %v591
        %612 = vadd.xlane.f32.xlu0 %v610
        %v613 = vpop.xlane.xlu0 %612
        %614 = vadd.xlane.f32.xlu0 %v611
        %v615 = vpop.xlane.xlu0 %614
        %v616 = vadd.f32 %v613, 0.0
        %v617 = vadd.f32 %v615, 0.0
        %s618 = scalar_lea.vmem [#allocation5], 1
        %v619 = vld [vmem:[%s618] sm:$0x1]
        %v620 = vsub.f32 1.0, %v619
        %v622 = vlaneseq
        %v623 = vshrl.u32 %v622, 7
        %v624 = vsub.s32 0, %v623
        %v625 = vrot.slane %v619, %v624
        %v627 = vmul.f32 %v608, %v625
        %v628 = vmul.f32 %v609, %v625
        %s629 = scalar_lea.vmem [#allocation7], 128
        %v630 = vld [vmem:[%s629] sm:$0xff]
        %v631 = vld [vmem:[%s629 + $0x8] sm:$0xff]
        %v632 = vld [vmem:[%s629 + $0x10] sm:$0xff]
        %v633 = vld [vmem:[%s629 + $0x18] sm:$0xff]
        %v634 = vld [vmem:[%s629 + $0x20] sm:$0xff]
        %v635 = vld [vmem:[%s629 + $0x28] sm:$0xff]
        %v636 = vld [vmem:[%s629 + $0x30] sm:$0xff]
        %v637 = vld [vmem:[%s629 + $0x38] sm:$0xff]
        %v638 = vld [vmem:[%s629 + $0x40] sm:$0xff]
        %v639 = vld [vmem:[%s629 + $0x48] sm:$0xff]
        %v640 = vld [vmem:[%s629 + $0x50] sm:$0xff]
        %v641 = vld [vmem:[%s629 + $0x58] sm:$0xff]
        %v642 = vld [vmem:[%s629 + $0x60] sm:$0xff]
        %v643 = vld [vmem:[%s629 + $0x68] sm:$0xff]
        %v644 = vld [vmem:[%s629 + $0x70] sm:$0xff]
        %v645 = vld [vmem:[%s629 + $0x78] sm:$0xff]
        %s646 = scalar_lea.vmem %s3, 1
        %v647 = vld [vmem:[%s646] sm:$0x1]
        %v649 = vlaneseq
        %v650 = vshrl.u32 %v649, 7
        %v651 = vsub.s32 0, %v650
        %v652 = vrot.slane %v647, %v651
        %654 = vmatprep.subr.mxu0 0.0
        %655 = vmatpush1.msra.mxu0 %v630
        %656 = vmatprep.subr.mxu0 0.0
        %657 = vmatpush1.msra.mxu0 %v631
        %658 = vmatprep.subr.mxu0 0.0
        %659 = vmatpush1.msra.mxu0 %v632
        %660 = vmatprep.subr.mxu0 0.0
        %661 = vmatpush1.msra.mxu0 %v633
        %662 = vmatprep.subr.mxu0 0.0
        %663 = vmatpush1.msra.mxu0 %v634
        %664 = vmatprep.subr.mxu0 0.0
        %665 = vmatpush1.msra.mxu0 %v635
        %666 = vmatprep.subr.mxu0 0.0
        %667 = vmatpush1.msra.mxu0 %v636
        %668 = vmatprep.subr.mxu0 0.0
        %669 = vmatpush1.msra.mxu0 %v637
        %670 = vmatprep.subr.mxu0 0.0
        %671 = vmatpush1.msra.mxu0 %v638
        %672 = vmatprep.subr.mxu0 0.0
        %673 = vmatpush1.msra.mxu0 %v639
        %674 = vmatprep.subr.mxu0 0.0
        %675 = vmatpush1.msra.mxu0 %v640
        %676 = vmatprep.subr.mxu0 0.0
        %677 = vmatpush1.msra.mxu0 %v641
        %678 = vmatprep.subr.mxu0 0.0
        %679 = vmatpush1.msra.mxu0 %v642
        %680 = vmatprep.subr.mxu0 0.0
        %681 = vmatpush1.msra.mxu0 %v643
        %682 = vmatprep.subr.mxu0 0.0
        %683 = vmatpush1.msra.mxu0 %v644
        %684 = vmatprep.subr.mxu0 0.0
        %685 = vmatpush1.msra.mxu0 %v645
        %686 = vmatprep.subr.mxu0 0.0
        %687 = vmatpush1.msra.mxu0 0.0
        %688 = vmatprep.subr.mxu0 0.0
        %689 = vmatpush1.msra.mxu0 0.0
        %690 = vmatprep.subr.mxu0 0.0
        %691 = vmatpush1.msra.mxu0 0.0
        %692 = vmatprep.subr.mxu0 0.0
        %693 = vmatpush1.msra.mxu0 0.0
        %694 = vmatprep.subr.mxu0 0.0
        %695 = vmatpush1.msra.mxu0 0.0
        %696 = vmatprep.subr.mxu0 0.0
        %697 = vmatpush1.msra.mxu0 0.0
        %698 = vmatprep.subr.mxu0 0.0
        %699 = vmatpush1.msra.mxu0 0.0
        %700 = vmatprep.subr.mxu0 0.0
        %701 = vmatpush1.msra.mxu0 0.0
        %702 = vmatprep.subr.mxu0 0.0
        %703 = vmatpush1.msra.mxu0 0.0
        %704 = vmatprep.subr.mxu0 0.0
        %705 = vmatpush1.msra.mxu0 0.0
        %706 = vmatprep.subr.mxu0 0.0
        %707 = vmatpush1.msra.mxu0 0.0
        %708 = vmatprep.subr.mxu0 0.0
        %709 = vmatpush1.msra.mxu0 0.0
        %710 = vmatprep.subr.mxu0 0.0
        %711 = vmatpush1.msra.mxu0 0.0
        %712 = vmatprep.subr.mxu0 0.0
        %713 = vmatpush1.msra.mxu0 0.0
        %714 = vmatprep.subr.mxu0 0.0
        %715 = vmatpush1.msra.mxu0 0.0
        %716 = vmatprep.subr.mxu0 0.0
        %717 = vmatpush1.msra.mxu0 0.0
        %718 = vmatprep.mubr.f32.mxu0 0.0
        %719 = vmatmul.mubr.f32.gmra.mrb[0].mxu0 %v627
        %v720 = vpop.f32.mrb[0].mxu0
        %v721 = vadd.f32 %v652, %v720
        %v722 = vpop.f32.mrb[0].mxu0
        %723 = vmatprep.mubr.f32.mxu0 0.0
        %724 = vmatmul.mubr.f32.gmra.mrb[0].mxu0 %v628
        %v725 = vpop.f32.mrb[0].mxu0
        %v726 = vadd.f32 %v652, %v725
        %v727 = vpop.f32.mrb[0].mxu0
        %728 = vdwg.mxu0
        %v729 = vtanh.pop %v721
        %v730 = vtanh.pop %v726
        %s731 = scalar_lea.vmem [#allocation8], 256
        %v732 = vld [vmem:[%s731] sm:$0xff]
        %v733 = vld [vmem:[%s731 + $0x8] sm:$0xff]
        %v734 = vld [vmem:[%s731 + $0x10] sm:$0xff]
        %v735 = vld [vmem:[%s731 + $0x18] sm:$0xff]
        %v736 = vld [vmem:[%s731 + $0x20] sm:$0xff]
        %v737 = vld [vmem:[%s731 + $0x28] sm:$0xff]
        %v738 = vld [vmem:[%s731 + $0x30] sm:$0xff]
        %v739 = vld [vmem:[%s731 + $0x38] sm:$0xff]
        %v740 = vld [vmem:[%s731 + $0x40] sm:$0xff]
        %v741 = vld [vmem:[%s731 + $0x48] sm:$0xff]
        %v742 = vld [vmem:[%s731 + $0x50] sm:$0xff]
        %v743 = vld [vmem:[%s731 + $0x58] sm:$0xff]
        %v744 = vld [vmem:[%s731 + $0x60] sm:$0xff]
        %v745 = vld [vmem:[%s731 + $0x68] sm:$0xff]
        %v746 = vld [vmem:[%s731 + $0x70] sm:$0xff]
        %v747 = vld [vmem:[%s731 + $0x78] sm:$0xff]
        %v748 = vld [vmem:[%s731 + $0x80] sm:$0xff]
        %v749 = vld [vmem:[%s731 + $0x88] sm:$0xff]
        %v750 = vld [vmem:[%s731 + $0x90] sm:$0xff]
        %v751 = vld [vmem:[%s731 + $0x98] sm:$0xff]
        %v752 = vld [vmem:[%s731 + $0xa0] sm:$0xff]
        %v753 = vld [vmem:[%s731 + $0xa8] sm:$0xff]
        %v754 = vld [vmem:[%s731 + $0xb0] sm:$0xff]
        %v755 = vld [vmem:[%s731 + $0xb8] sm:$0xff]
        %v756 = vld [vmem:[%s731 + $0xc0] sm:$0xff]
        %v757 = vld [vmem:[%s731 + $0xc8] sm:$0xff]
        %v758 = vld [vmem:[%s731 + $0xd0] sm:$0xff]
        %v759 = vld [vmem:[%s731 + $0xd8] sm:$0xff]
        %v760 = vld [vmem:[%s731 + $0xe0] sm:$0xff]
        %v761 = vld [vmem:[%s731 + $0xe8] sm:$0xff]
        %v762 = vld [vmem:[%s731 + $0xf0] sm:$0xff]
        %v763 = vld [vmem:[%s731 + $0xf8] sm:$0xff]
        %s764 = scalar_lea.vmem %s5, 2
        %v765 = vld [vmem:[%s764] sm:$0x3]
        %v767 = vlaneseq
        %v768 = vshrl.u32 %v767, 7
        %v769 = vsub.s32 0, %v768
        %v770 = vrot.slane %v765, %v769
        %v771 = vlaneseq
        %v772 = vshrl.u32 %v771, 7
        %v773 = vsub.s32 1, %v772
        %v774 = vrot.slane %v765, %v773
        %777 = vmatprep.subr.mxu0 %v733
        %778 = vmatpush1.msra.mxu0 %v732
        %779 = vmatprep.subr.mxu0 %v735
        %780 = vmatpush1.msra.mxu0 %v734
        %781 = vmatprep.subr.mxu0 %v737
        %782 = vmatpush1.msra.mxu0 %v736
        %783 = vmatprep.subr.mxu0 %v739
        %784 = vmatpush1.msra.mxu0 %v738
        %785 = vmatprep.subr.mxu0 %v741
        %786 = vmatpush1.msra.mxu0 %v740
        %787 = vmatprep.subr.mxu0 %v743
        %788 = vmatpush1.msra.mxu0 %v742
        %789 = vmatprep.subr.mxu0 %v745
        %790 = vmatpush1.msra.mxu0 %v744
        %791 = vmatprep.subr.mxu0 %v747
        %792 = vmatpush1.msra.mxu0 %v746
        %793 = vmatprep.subr.mxu0 %v749
        %794 = vmatpush1.msra.mxu0 %v748
        %795 = vmatprep.subr.mxu0 %v751
        %796 = vmatpush1.msra.mxu0 %v750
        %797 = vmatprep.subr.mxu0 %v753
        %798 = vmatpush1.msra.mxu0 %v752
        %799 = vmatprep.subr.mxu0 %v755
        %800 = vmatpush1.msra.mxu0 %v754
        %801 = vmatprep.subr.mxu0 %v757
        %802 = vmatpush1.msra.mxu0 %v756
        %803 = vmatprep.subr.mxu0 %v759
        %804 = vmatpush1.msra.mxu0 %v758
        %805 = vmatprep.subr.mxu0 %v761
        %806 = vmatpush1.msra.mxu0 %v760
        %807 = vmatprep.subr.mxu0 %v763
        %808 = vmatpush1.msra.mxu0 %v762
        %809 = vmatprep.subr.mxu0 0.0
        %810 = vmatpush1.msra.mxu0 0.0
        %811 = vmatprep.subr.mxu0 0.0
        %812 = vmatpush1.msra.mxu0 0.0
        %813 = vmatprep.subr.mxu0 0.0
        %814 = vmatpush1.msra.mxu0 0.0
        %815 = vmatprep.subr.mxu0 0.0
        %816 = vmatpush1.msra.mxu0 0.0
        %817 = vmatprep.subr.mxu0 0.0
        %818 = vmatpush1.msra.mxu0 0.0
        %819 = vmatprep.subr.mxu0 0.0
        %820 = vmatpush1.msra.mxu0 0.0
        %821 = vmatprep.subr.mxu0 0.0
        %822 = vmatpush1.msra.mxu0 0.0
        %823 = vmatprep.subr.mxu0 0.0
        %824 = vmatpush1.msra.mxu0 0.0
        %825 = vmatprep.subr.mxu0 0.0
        %826 = vmatpush1.msra.mxu0 0.0
        %827 = vmatprep.subr.mxu0 0.0
        %828 = vmatpush1.msra.mxu0 0.0
        %829 = vmatprep.subr.mxu0 0.0
        %830 = vmatpush1.msra.mxu0 0.0
        %831 = vmatprep.subr.mxu0 0.0
        %832 = vmatpush1.msra.mxu0 0.0
        %833 = vmatprep.subr.mxu0 0.0
        %834 = vmatpush1.msra.mxu0 0.0
        %835 = vmatprep.subr.mxu0 0.0
        %836 = vmatpush1.msra.mxu0 0.0
        %837 = vmatprep.subr.mxu0 0.0
        %838 = vmatpush1.msra.mxu0 0.0
        %839 = vmatprep.subr.mxu0 0.0
        %840 = vmatpush1.msra.mxu0 0.0
        %841 = vmatprep.mubr.f32.mxu0 0.0
        %842 = vmatmul.mubr.f32.gmra.mrb[0].mxu0 %v729
        %v843 = vpop.f32.mrb[0].mxu0
        %v844 = vadd.f32 %v770, %v843
        %v845 = vpop.f32.mrb[0].mxu0
        %v846 = vadd.f32 %v774, %v845
        %847 = vmatprep.mubr.f32.mxu0 0.0
        %848 = vmatmul.mubr.f32.gmra.mrb[0].mxu0 %v730
        %v849 = vpop.f32.mrb[0].mxu0
        %v850 = vadd.f32 %v770, %v849
        %v851 = vpop.f32.mrb[0].mxu0
        %v852 = vadd.f32 %v774, %v851
        %853 = vdwg.mxu0
        %v854 = vtanh.pop %v844
        %v855 = vtanh.pop %v850
        %v856 = vmul.f32 %v854, 1.442695
        %v857 = vpow.pop %v856
        %v858 = vmul.f32 %v855, 1.442695
        %v859 = vpow.pop %v858
        %v860 = vmul.f32 %v608, %v857
        %v861 = vmul.f32 %v609, %v859
        %v862 = vadd.f32 %v860, %v846
        %v863 = vadd.f32 %v861, %v852
        %v865 = vlaneseq
        %v866 = vshrl.u32 %v865, 7
        %v867 = vsub.s32 0, %v866
        %v868 = vrot.slane %v620, %v867
        %v870 = vmul.f32 %v868, %v862
        %v871 = vmul.f32 %v868, %v863
        %v872 = vadd.f32 %v627, %v870
        %v873 = vadd.f32 %v628, %v871
        %v874 = vmul.f32 %v868, %v854
        %v875 = vmul.f32 %v868, %v855
        %876 = vadd.xlane.f32.xlu0 %v874
        %v877 = vpop.xlane.xlu0 %876
        %878 = vadd.xlane.f32.xlu0 %v875
        %v879 = vpop.xlane.xlu0 %878
        %v880 = vadd.f32 %v616, %v877
        %v881 = vadd.f32 %v617, %v879
        %s882 = scalar_lea.vmem [#allocation5], 2
        %v883 = vld [vmem:[%s882] sm:$0x1]
        %v884 = vsub.f32 1.0, %v883
        %v886 = vlaneseq
        %v887 = vshrl.u32 %v886, 7
        %v888 = vsub.s32 0, %v887
        %v889 = vrot.slane %v883, %v888
        %v891 = vmul.f32 %v872, %v889
        %v892 = vmul.f32 %v873, %v889
        %s893 = scalar_lea.vmem [#allocation7], 256
        %v894 = vld [vmem:[%s893] sm:$0xff]
        %v895 = vld [vmem:[%s893 + $0x8] sm:$0xff]
        %v896 = vld [vmem:[%s893 + $0x10] sm:$0xff]
        %v897 = vld [vmem:[%s893 + $0x18] sm:$0xff]
        %v898 = vld [vmem:[%s893 + $0x20] sm:$0xff]
        %v899 = vld [vmem:[%s893 + $0x28] sm:$0xff]
        %v900 = vld [vmem:[%s893 + $0x30] sm:$0xff]
        %v901 = vld [vmem:[%s893 + $0x38] sm:$0xff]
        %v902 = vld [vmem:[%s893 + $0x40] sm:$0xff]
        %v903 = vld [vmem:[%s893 + $0x48] sm:$0xff]
        %v904 = vld [vmem:[%s893 + $0x50] sm:$0xff]
        %v905 = vld [vmem:[%s893 + $0x58] sm:$0xff]
        %v906 = vld [vmem:[%s893 + $0x60] sm:$0xff]
        %v907 = vld [vmem:[%s893 + $0x68] sm:$0xff]
        %v908 = vld [vmem:[%s893 + $0x70] sm:$0xff]
        %v909 = vld [vmem:[%s893 + $0x78] sm:$0xff]
        %s910 = scalar_lea.vmem %s3, 2
        %v911 = vld [vmem:[%s910] sm:$0x1]
        %v913 = vlaneseq
        %v914 = vshrl.u32 %v913, 7
        %v915 = vsub.s32 0, %v914
        %v916 = vrot.slane %v911, %v915
        %918 = vmatprep.subr.mxu0 0.0
        %919 = vmatpush1.msra.mxu0 %v894
        %920 = vmatprep.subr.mxu0 0.0
        %921 = vmatpush1.msra.mxu0 %v895
        %922 = vmatprep.subr.mxu0 0.0
        %923 = vmatpush1.msra.mxu0 %v896
        %924 = vmatprep.subr.mxu0 0.0
        %925 = vmatpush1.msra.mxu0 %v897
        %926 = vmatprep.subr.mxu0 0.0
        %927 = vmatpush1.msra.mxu0 %v898
        %928 = vmatprep.subr.mxu0 0.0
        %929 = vmatpush1.msra.mxu0 %v899
        %930 = vmatprep.subr.mxu0 0.0
        %931 = vmatpush1.msra.mxu0 %v900
        %932 = vmatprep.subr.mxu0 0.0
        %933 = vmatpush1.msra.mxu0 %v901
        %934 = vmatprep.subr.mxu0 0.0
        %935 = vmatpush1.msra.mxu0 %v902
        %936 = vmatprep.subr.mxu0 0.0
        %937 = vmatpush1.msra.mxu0 %v903
        %938 = vmatprep.subr.mxu0 0.0
        %939 = vmatpush1.msra.mxu0 %v904
        %940 = vmatprep.subr.mxu0 0.0
        %941 = vmatpush1.msra.mxu0 %v905
        %942 = vmatprep.subr.mxu0 0.0
        %943 = vmatpush1.msra.mxu0 %v906
        %944 = vmatprep.subr.mxu0 0.0
        %945 = vmatpush1.msra.mxu0 %v907
        %946 = vmatprep.subr.mxu0 0.0
        %947 = vmatpush1.msra.mxu0 %v908
        %948 = vmatprep.subr.mxu0 0.0
        %949 = vmatpush1.msra.mxu0 %v909
        %950 = vmatprep.subr.mxu0 0.0
        %951 = vmatpush1.msra.mxu0 0.0
        %952 = vmatprep.subr.mxu0 0.0
        %953 = vmatpush1.msra.mxu0 0.0
        %954 = vmatprep.subr.mxu0 0.0
        %955 = vmatpush1.msra.mxu0 0.0
        %956 = vmatprep.subr.mxu0 0.0
        %957 = vmatpush1.msra.mxu0 0.0
        %958 = vmatprep.subr.mxu0 0.0
        %959 = vmatpush1.msra.mxu0 0.0
        %960 = vmatprep.subr.mxu0 0.0
        %961 = vmatpush1.msra.mxu0 0.0
        %962 = vmatprep.subr.mxu0 0.0
        %963 = vmatpush1.msra.mxu0 0.0
        %964 = vmatprep.subr.mxu0 0.0
        %965 = vmatpush1.msra.mxu0 0.0
        %966 = vmatprep.subr.mxu0 0.0
        %967 = vmatpush1.msra.mxu0 0.0
        %968 = vmatprep.subr.mxu0 0.0
        %969 = vmatpush1.msra.mxu0 0.0
        %970 = vmatprep.subr.mxu0 0.0
        %971 = vmatpush1.msra.mxu0 0.0
        %972 = vmatprep.subr.mxu0 0.0
        %973 = vmatpush1.msra.mxu0 0.0
        %974 = vmatprep.subr.mxu0 0.0
        %975 = vmatpush1.msra.mxu0 0.0
        %976 = vmatprep.subr.mxu0 0.0
        %977 = vmatpush1.msra.mxu0 0.0
        %978 = vmatprep.subr.mxu0 0.0
        %979 = vmatpush1.msra.mxu0 0.0
        %980 = vmatprep.subr.mxu0 0.0
        %981 = vmatpush1.msra.mxu0 0.0
        %982 = vmatprep.mubr.f32.mxu0 0.0
        %983 = vmatmul.mubr.f32.gmra.mrb[0].mxu0 %v891
        %v984 = vpop.f32.mrb[0].mxu0
        %v985 = vadd.f32 %v916, %v984
        %v986 = vpop.f32.mrb[0].mxu0
        %987 = vmatprep.mubr.f32.mxu0 0.0
        %988 = vmatmul.mubr.f32.gmra.mrb[0].mxu0 %v892
        %v989 = vpop.f32.mrb[0].mxu0
        %v990 = vadd.f32 %v916, %v989
        %v991 = vpop.f32.mrb[0].mxu0
        %992 = vdwg.mxu0
        %v993 = vtanh.pop %v985
        %v994 = vtanh.pop %v990
        %s995 = scalar_lea.vmem [#allocation8], 512
        %v996 = vld [vmem:[%s995] sm:$0xff]
        %v997 = vld [vmem:[%s995 + $0x8] sm:$0xff]
        %v998 = vld [vmem:[%s995 + $0x10] sm:$0xff]
        %v999 = vld [vmem:[%s995 + $0x18] sm:$0xff]
        %v1000 = vld [vmem:[%s995 + $0x20] sm:$0xff]
        %v1001 = vld [vmem:[%s995 + $0x28] sm:$0xff]
        %v1002 = vld [vmem:[%s995 + $0x30] sm:$0xff]
        %v1003 = vld [vmem:[%s995 + $0x38] sm:$0xff]
        %v1004 = vld [vmem:[%s995 + $0x40] sm:$0xff]
        %v1005 = vld [vmem:[%s995 + $0x48] sm:$0xff]
        %v1006 = vld [vmem:[%s995 + $0x50] sm:$0xff]
        %v1007 = vld [vmem:[%s995 + $0x58] sm:$0xff]
        %v1008 = vld [vmem:[%s995 + $0x60] sm:$0xff]
        %v1009 = vld [vmem:[%s995 + $0x68] sm:$0xff]
        %v1010 = vld [vmem:[%s995 + $0x70] sm:$0xff]
        %v1011 = vld [vmem:[%s995 + $0x78] sm:$0xff]
        %v1012 = vld [vmem:[%s995 + $0x80] sm:$0xff]
        %v1013 = vld [vmem:[%s995 + $0x88] sm:$0xff]
        %v1014 = vld [vmem:[%s995 + $0x90] sm:$0xff]
        %v1015 = vld [vmem:[%s995 + $0x98] sm:$0xff]
        %v1016 = vld [vmem:[%s995 + $0xa0] sm:$0xff]
        %v1017 = vld [vmem:[%s995 + $0xa8] sm:$0xff]
        %v1018 = vld [vmem:[%s995 + $0xb0] sm:$0xff]
        %v1019 = vld [vmem:[%s995 + $0xb8] sm:$0xff]
        %v1020 = vld [vmem:[%s995 + $0xc0] sm:$0xff]
        %v1021 = vld [vmem:[%s995 + $0xc8] sm:$0xff]
        %v1022 = vld [vmem:[%s995 + $0xd0] sm:$0xff]
        %v1023 = vld [vmem:[%s995 + $0xd8] sm:$0xff]
        %v1024 = vld [vmem:[%s995 + $0xe0] sm:$0xff]
        %v1025 = vld [vmem:[%s995 + $0xe8] sm:$0xff]
        %v1026 = vld [vmem:[%s995 + $0xf0] sm:$0xff]
        %v1027 = vld [vmem:[%s995 + $0xf8] sm:$0xff]
        %s1028 = scalar_lea.vmem %s5, 4
        %v1029 = vld [vmem:[%s1028] sm:$0x3]
        %v1031 = vlaneseq
        %v1032 = vshrl.u32 %v1031, 7
        %v1033 = vsub.s32 0, %v1032
        %v1034 = vrot.slane %v1029, %v1033
        %v1035 = vlaneseq
        %v1036 = vshrl.u32 %v1035, 7
        %v1037 = vsub.s32 1, %v1036
        %v1038 = vrot.slane %v1029, %v1037
        %1041 = vmatprep.subr.mxu0 %v997
        %1042 = vmatpush1.msra.mxu0 %v996
        %1043 = vmatprep.subr.mxu0 %v999
        %1044 = vmatpush1.msra.mxu0 %v998
        %1045 = vmatprep.subr.mxu0 %v1001
        %1046 = vmatpush1.msra.mxu0 %v1000
        %1047 = vmatprep.subr.mxu0 %v1003
        %1048 = vmatpush1.msra.mxu0 %v1002
        %1049 = vmatprep.subr.mxu0 %v1005
        %1050 = vmatpush1.msra.mxu0 %v1004
        %1051 = vmatprep.subr.mxu0 %v1007
        %1052 = vmatpush1.msra.mxu0 %v1006
        %1053 = vmatprep.subr.mxu0 %v1009
        %1054 = vmatpush1.msra.mxu0 %v1008
        %1055 = vmatprep.subr.mxu0 %v1011
        %1056 = vmatpush1.msra.mxu0 %v1010
        %1057 = vmatprep.subr.mxu0 %v1013
        %1058 = vmatpush1.msra.mxu0 %v1012
        %1059 = vmatprep.subr.mxu0 %v1015
        %1060 = vmatpush1.msra.mxu0 %v1014
        %1061 = vmatprep.subr.mxu0 %v1017
        %1062 = vmatpush1.msra.mxu0 %v1016
        %1063 = vmatprep.subr.mxu0 %v1019
        %1064 = vmatpush1.msra.mxu0 %v1018
        %1065 = vmatprep.subr.mxu0 %v1021
        %1066 = vmatpush1.msra.mxu0 %v1020
        %1067 = vmatprep.subr.mxu0 %v1023
        %1068 = vmatpush1.msra.mxu0 %v1022
        %1069 = vmatprep.subr.mxu0 %v1025
        %1070 = vmatpush1.msra.mxu0 %v1024
        %1071 = vmatprep.subr.mxu0 %v1027
        %1072 = vmatpush1.msra.mxu0 %v1026
        %1073 = vmatprep.subr.mxu0 0.0
        %1074 = vmatpush1.msra.mxu0 0.0
        %1075 = vmatprep.subr.mxu0 0.0
        %1076 = vmatpush1.msra.mxu0 0.0
        %1077 = vmatprep.subr.mxu0 0.0
        %1078 = vmatpush1.msra.mxu0 0.0
        %1079 = vmatprep.subr.mxu0 0.0
        %1080 = vmatpush1.msra.mxu0 0.0
        %1081 = vmatprep.subr.mxu0 0.0
        %1082 = vmatpush1.msra.mxu0 0.0
        %1083 = vmatprep.subr.mxu0 0.0
        %1084 = vmatpush1.msra.mxu0 0.0
        %1085 = vmatprep.subr.mxu0 0.0
        %1086 = vmatpush1.msra.mxu0 0.0
        %1087 = vmatprep.subr.mxu0 0.0
        %1088 = vmatpush1.msra.mxu0 0.0
        %1089 = vmatprep.subr.mxu0 0.0
        %1090 = vmatpush1.msra.mxu0 0.0
        %1091 = vmatprep.subr.mxu0 0.0
        %1092 = vmatpush1.msra.mxu0 0.0
        %1093 = vmatprep.subr.mxu0 0.0
        %1094 = vmatpush1.msra.mxu0 0.0
        %1095 = vmatprep.subr.mxu0 0.0
        %1096 = vmatpush1.msra.mxu0 0.0
        %1097 = vmatprep.subr.mxu0 0.0
        %1098 = vmatpush1.msra.mxu0 0.0
        %1099 = vmatprep.subr.mxu0 0.0
        %1100 = vmatpush1.msra.mxu0 0.0
        %1101 = vmatprep.subr.mxu0 0.0
        %1102 = vmatpush1.msra.mxu0 0.0
        %1103 = vmatprep.subr.mxu0 0.0
        %1104 = vmatpush1.msra.mxu0 0.0
        %1105 = vmatprep.mubr.f32.mxu0 0.0
        %1106 = vmatmul.mubr.f32.gmra.mrb[0].mxu0 %v993
        %v1107 = vpop.f32.mrb[0].mxu0
        %v1108 = vadd.f32 %v1034, %v1107
        %v1109 = vpop.f32.mrb[0].mxu0
        %v1110 = vadd.f32 %v1038, %v1109
        %1111 = vmatprep.mubr.f32.mxu0 0.0
        %1112 = vmatmul.mubr.f32.gmra.mrb[0].mxu0 %v994
        %v1113 = vpop.f32.mrb[0].mxu0
        %v1114 = vadd.f32 %v1034, %v1113
        %v1115 = vpop.f32.mrb[0].mxu0
        %v1116 = vadd.f32 %v1038, %v1115
        %1117 = vdwg.mxu0
        %v1118 = vtanh.pop %v1108
        %v1119 = vtanh.pop %v1114
        %v1120 = vmul.f32 %v1118, 1.442695
        %v1121 = vpow.pop %v1120
        %v1122 = vmul.f32 %v1119, 1.442695
        %v1123 = vpow.pop %v1122
        %v1124 = vmul.f32 %v872, %v1121
        %v1125 = vmul.f32 %v873, %v1123
        %v1126 = vadd.f32 %v1124, %v1110
        %v1127 = vadd.f32 %v1125, %v1116
        %v1129 = vlaneseq
        %v1130 = vshrl.u32 %v1129, 7
        %v1131 = vsub.s32 0, %v1130
        %v1132 = vrot.slane %v884, %v1131
        %v1134 = vmul.f32 %v1132, %v1126
        %v1135 = vmul.f32 %v1132, %v1127
        %v1136 = vadd.f32 %v891, %v1134
        %v1137 = vadd.f32 %v892, %v1135
        %v1138 = vmul.f32 %v1132, %v1118
        %v1139 = vmul.f32 %v1132, %v1119
        %1140 = vadd.xlane.f32.xlu0 %v1138
        %v1141 = vpop.xlane.xlu0 %1140
        %1142 = vadd.xlane.f32.xlu0 %v1139
        %v1143 = vpop.xlane.xlu0 %1142
        %v1144 = vadd.f32 %v880, %v1141
        %v1145 = vadd.f32 %v881, %v1143
        %s1146 = scalar_lea.vmem [#allocation5], 3
        %v1147 = vld [vmem:[%s1146] sm:$0x1]
        %v1148 = vsub.f32 1.0, %v1147
        %v1150 = vlaneseq
        %v1151 = vshrl.u32 %v1150, 7
        %v1152 = vsub.s32 0, %v1151
        %v1153 = vrot.slane %v1147, %v1152
        %v1155 = vmul.f32 %v1136, %v1153
        %v1156 = vmul.f32 %v1137, %v1153
        %s1157 = scalar_lea.vmem [#allocation7], 384
        %v1158 = vld [vmem:[%s1157] sm:$0xff]
        %v1159 = vld [vmem:[%s1157 + $0x8] sm:$0xff]
        %v1160 = vld [vmem:[%s1157 + $0x10] sm:$0xff]
        %v1161 = vld [vmem:[%s1157 + $0x18] sm:$0xff]
        %v1162 = vld [vmem:[%s1157 + $0x20] sm:$0xff]
        %v1163 = vld [vmem:[%s1157 + $0x28] sm:$0xff]
        %v1164 = vld [vmem:[%s1157 + $0x30] sm:$0xff]
        %v1165 = vld [vmem:[%s1157 + $0x38] sm:$0xff]
        %v1166 = vld [vmem:[%s1157 + $0x40] sm:$0xff]
        %v1167 = vld [vmem:[%s1157 + $0x48] sm:$0xff]
        %v1168 = vld [vmem:[%s1157 + $0x50] sm:$0xff]
        %v1169 = vld [vmem:[%s1157 + $0x58] sm:$0xff]
        %v1170 = vld [vmem:[%s1157 + $0x60] sm:$0xff]
        %v1171 = vld [vmem:[%s1157 + $0x68] sm:$0xff]
        %v1172 = vld [vmem:[%s1157 + $0x70] sm:$0xff]
        %v1173 = vld [vmem:[%s1157 + $0x78] sm:$0xff]
        %s1174 = scalar_lea.vmem %s3, 3
        %v1175 = vld [vmem:[%s1174] sm:$0x1]
        %v1177 = vlaneseq
        %v1178 = vshrl.u32 %v1177, 7
        %v1179 = vsub.s32 0, %v1178
        %v1180 = vrot.slane %v1175, %v1179
        %1182 = vmatprep.subr.mxu0 0.0
        %1183 = vmatpush1.msra.mxu0 %v1158
        %1184 = vmatprep.subr.mxu0 0.0
        %1185 = vmatpush1.msra.mxu0 %v1159
        %1186 = vmatprep.subr.mxu0 0.0
        %1187 = vmatpush1.msra.mxu0 %v1160
        %1188 = vmatprep.subr.mxu0 0.0
        %1189 = vmatpush1.msra.mxu0 %v1161
        %1190 = vmatprep.subr.mxu0 0.0
        %1191 = vmatpush1.msra.mxu0 %v1162
        %1192 = vmatprep.subr.mxu0 0.0
        %1193 = vmatpush1.msra.mxu0 %v1163
        %1194 = vmatprep.subr.mxu0 0.0
        %1195 = vmatpush1.msra.mxu0 %v1164
        %1196 = vmatprep.subr.mxu0 0.0
        %1197 = vmatpush1.msra.mxu0 %v1165
        %1198 = vmatprep.subr.mxu0 0.0
        %1199 = vmatpush1.msra.mxu0 %v1166
        %1200 = vmatprep.subr.mxu0 0.0
        %1201 = vmatpush1.msra.mxu0 %v1167
        %1202 = vmatprep.subr.mxu0 0.0
        %1203 = vmatpush1.msra.mxu0 %v1168
        %1204 = vmatprep.subr.mxu0 0.0
        %1205 = vmatpush1.msra.mxu0 %v1169
        %1206 = vmatprep.subr.mxu0 0.0
        %1207 = vmatpush1.msra.mxu0 %v1170
        %1208 = vmatprep.subr.mxu0 0.0
        %1209 = vmatpush1.msra.mxu0 %v1171
        %1210 = vmatprep.subr.mxu0 0.0
        %1211 = vmatpush1.msra.mxu0 %v1172
        %1212 = vmatprep.subr.mxu0 0.0
        %1213 = vmatpush1.msra.mxu0 %v1173
        %1214 = vmatprep.subr.mxu0 0.0
        %1215 = vmatpush1.msra.mxu0 0.0
        %1216 = vmatprep.subr.mxu0 0.0
        %1217 = vmatpush1.msra.mxu0 0.0
        %1218 = vmatprep.subr.mxu0 0.0
        %1219 = vmatpush1.msra.mxu0 0.0
        %1220 = vmatprep.subr.mxu0 0.0
        %1221 = vmatpush1.msra.mxu0 0.0
        %1222 = vmatprep.subr.mxu0 0.0
        %1223 = vmatpush1.msra.mxu0 0.0
        %1224 = vmatprep.subr.mxu0 0.0
        %1225 = vmatpush1.msra.mxu0 0.0
        %1226 = vmatprep.subr.mxu0 0.0
        %1227 = vmatpush1.msra.mxu0 0.0
        %1228 = vmatprep.subr.mxu0 0.0
        %1229 = vmatpush1.msra.mxu0 0.0
        %1230 = vmatprep.subr.mxu0 0.0
        %1231 = vmatpush1.msra.mxu0 0.0
        %1232 = vmatprep.subr.mxu0 0.0
        %1233 = vmatpush1.msra.mxu0 0.0
        %1234 = vmatprep.subr.mxu0 0.0
        %1235 = vmatpush1.msra.mxu0 0.0
        %1236 = vmatprep.subr.mxu0 0.0
        %1237 = vmatpush1.msra.mxu0 0.0
        %1238 = vmatprep.subr.mxu0 0.0
        %1239 = vmatpush1.msra.mxu0 0.0
        %1240 = vmatprep.subr.mxu0 0.0
        %1241 = vmatpush1.msra.mxu0 0.0
        %1242 = vmatprep.subr.mxu0 0.0
        %1243 = vmatpush1.msra.mxu0 0.0
        %1244 = vmatprep.subr.mxu0 0.0
        %1245 = vmatpush1.msra.mxu0 0.0
        %1246 = vmatprep.mubr.f32.mxu0 0.0
        %1247 = vmatmul.mubr.f32.gmra.mrb[0].mxu0 %v1155
        %v1248 = vpop.f32.mrb[0].mxu0
        %v1249 = vadd.f32 %v1180, %v1248
        %v1250 = vpop.f32.mrb[0].mxu0
        %1251 = vmatprep.mubr.f32.mxu0 0.0
        %1252 = vmatmul.mubr.f32.gmra.mrb[0].mxu0 %v1156
        %v1253 = vpop.f32.mrb[0].mxu0
        %v1254 = vadd.f32 %v1180, %v1253
        %v1255 = vpop.f32.mrb[0].mxu0
        %1256 = vdwg.mxu0
        %v1257 = vtanh.pop %v1249
        %v1258 = vtanh.pop %v1254
        %s1259 = scalar_lea.vmem [#allocation8], 768
        %v1260 = vld [vmem:[%s1259] sm:$0xff]
        %v1261 = vld [vmem:[%s1259 + $0x8] sm:$0xff]
        %v1262 = vld [vmem:[%s1259 + $0x10] sm:$0xff]
        %v1263 = vld [vmem:[%s1259 + $0x18] sm:$0xff]
        %v1264 = vld [vmem:[%s1259 + $0x20] sm:$0xff]
        %v1265 = vld [vmem:[%s1259 + $0x28] sm:$0xff]
        %v1266 = vld [vmem:[%s1259 + $0x30] sm:$0xff]
        %v1267 = vld [vmem:[%s1259 + $0x38] sm:$0xff]
        %v1268 = vld [vmem:[%s1259 + $0x40] sm:$0xff]
        %v1269 = vld [vmem:[%s1259 + $0x48] sm:$0xff]
        %v1270 = vld [vmem:[%s1259 + $0x50] sm:$0xff]
        %v1271 = vld [vmem:[%s1259 + $0x58] sm:$0xff]
        %v1272 = vld [vmem:[%s1259 + $0x60] sm:$0xff]
        %v1273 = vld [vmem:[%s1259 + $0x68] sm:$0xff]
        %v1274 = vld [vmem:[%s1259 + $0x70] sm:$0xff]
        %v1275 = vld [vmem:[%s1259 + $0x78] sm:$0xff]
        %v1276 = vld [vmem:[%s1259 + $0x80] sm:$0xff]
        %v1277 = vld [vmem:[%s1259 + $0x88] sm:$0xff]
        %v1278 = vld [vmem:[%s1259 + $0x90] sm:$0xff]
        %v1279 = vld [vmem:[%s1259 + $0x98] sm:$0xff]
        %v1280 = vld [vmem:[%s1259 + $0xa0] sm:$0xff]
        %v1281 = vld [vmem:[%s1259 + $0xa8] sm:$0xff]
        %v1282 = vld [vmem:[%s1259 + $0xb0] sm:$0xff]
        %v1283 = vld [vmem:[%s1259 + $0xb8] sm:$0xff]
        %v1284 = vld [vmem:[%s1259 + $0xc0] sm:$0xff]
        %v1285 = vld [vmem:[%s1259 + $0xc8] sm:$0xff]
        %v1286 = vld [vmem:[%s1259 + $0xd0] sm:$0xff]
        %v1287 = vld [vmem:[%s1259 + $0xd8] sm:$0xff]
        %v1288 = vld [vmem:[%s1259 + $0xe0] sm:$0xff]
        %v1289 = vld [vmem:[%s1259 + $0xe8] sm:$0xff]
        %v1290 = vld [vmem:[%s1259 + $0xf0] sm:$0xff]
        %v1291 = vld [vmem:[%s1259 + $0xf8] sm:$0xff]
        %s1292 = scalar_lea.vmem %s5, 6
        %v1293 = vld [vmem:[%s1292] sm:$0x3]
        %v1295 = vlaneseq
        %v1296 = vshrl.u32 %v1295, 7
        %v1297 = vsub.s32 0, %v1296
        %v1298 = vrot.slane %v1293, %v1297
        %v1299 = vlaneseq
        %v1300 = vshrl.u32 %v1299, 7
        %v1301 = vsub.s32 1, %v1300
        %v1302 = vrot.slane %v1293, %v1301
        %1305 = vmatprep.subr.mxu0 %v1261
        %1306 = vmatpush1.msra.mxu0 %v1260
        %1307 = vmatprep.subr.mxu0 %v1263
        %1308 = vmatpush1.msra.mxu0 %v1262
        %1309 = vmatprep.subr.mxu0 %v1265
        %1310 = vmatpush1.msra.mxu0 %v1264
        %1311 = vmatprep.subr.mxu0 %v1267
        %1312 = vmatpush1.msra.mxu0 %v1266
        %1313 = vmatprep.subr.mxu0 %v1269
        %1314 = vmatpush1.msra.mxu0 %v1268
        %1315 = vmatprep.subr.mxu0 %v1271
        %1316 = vmatpush1.msra.mxu0 %v1270
        %1317 = vmatprep.subr.mxu0 %v1273
        %1318 = vmatpush1.msra.mxu0 %v1272
        %1319 = vmatprep.subr.mxu0 %v1275
        %1320 = vmatpush1.msra.mxu0 %v1274
        %1321 = vmatprep.subr.mxu0 %v1277
        %1322 = vmatpush1.msra.mxu0 %v1276
        %1323 = vmatprep.subr.mxu0 %v1279
        %1324 = vmatpush1.msra.mxu0 %v1278
        %1325 = vmatprep.subr.mxu0 %v1281
        %1326 = vmatpush1.msra.mxu0 %v1280
        %1327 = vmatprep.subr.mxu0 %v1283
        %1328 = vmatpush1.msra.mxu0 %v1282
        %1329 = vmatprep.subr.mxu0 %v1285
        %1330 = vmatpush1.msra.mxu0 %v1284
        %1331 = vmatprep.subr.mxu0 %v1287
        %1332 = vmatpush1.msra.mxu0 %v1286
        %1333 = vmatprep.subr.mxu0 %v1289
        %1334 = vmatpush1.msra.mxu0 %v1288
        %1335 = vmatprep.subr.mxu0 %v1291
        %1336 = vmatpush1.msra.mxu0 %v1290
        %1337 = vmatprep.subr.mxu0 0.0
        %1338 = vmatpush1.msra.mxu0 0.0
        %1339 = vmatprep.subr.mxu0 0.0
        %1340 = vmatpush1.msra.mxu0 0.0
        %1341 = vmatprep.subr.mxu0 0.0
        %1342 = vmatpush1.msra.mxu0 0.0
        %1343 = vmatprep.subr.mxu0 0.0
        %1344 = vmatpush1.msra.mxu0 0.0
        %1345 = vmatprep.subr.mxu0 0.0
        %1346 = vmatpush1.msra.mxu0 0.0
        %1347 = vmatprep.subr.mxu0 0.0
        %1348 = vmatpush1.msra.mxu0 0.0
        %1349 = vmatprep.subr.mxu0 0.0
        %1350 = vmatpush1.msra.mxu0 0.0
        %1351 = vmatprep.subr.mxu0 0.0
        %1352 = vmatpush1.msra.mxu0 0.0
        %1353 = vmatprep.subr.mxu0 0.0
        %1354 = vmatpush1.msra.mxu0 0.0
        %1355 = vmatprep.subr.mxu0 0.0
        %1356 = vmatpush1.msra.mxu0 0.0
        %1357 = vmatprep.subr.mxu0 0.0
        %1358 = vmatpush1.msra.mxu0 0.0
        %1359 = vmatprep.subr.mxu0 0.0
        %1360 = vmatpush1.msra.mxu0 0.0
        %1361 = vmatprep.subr.mxu0 0.0
        %1362 = vmatpush1.msra.mxu0 0.0
        %1363 = vmatprep.subr.mxu0 0.0
        %1364 = vmatpush1.msra.mxu0 0.0
        %1365 = vmatprep.subr.mxu0 0.0
        %1366 = vmatpush1.msra.mxu0 0.0
        %1367 = vmatprep.subr.mxu0 0.0
        %1368 = vmatpush1.msra.mxu0 0.0
        %1369 = vmatprep.mubr.f32.mxu0 0.0
        %1370 = vmatmul.mubr.f32.gmra.mrb[0].mxu0 %v1257
        %v1371 = vpop.f32.mrb[0].mxu0
        %v1372 = vadd.f32 %v1298, %v1371
        %v1373 = vpop.f32.mrb[0].mxu0
        %v1374 = vadd.f32 %v1302, %v1373
        %1375 = vmatprep.mubr.f32.mxu0 0.0
        %1376 = vmatmul.mubr.f32.gmra.mrb[0].mxu0 %v1258
        %v1377 = vpop.f32.mrb[0].mxu0
        %v1378 = vadd.f32 %v1298, %v1377
        %v1379 = vpop.f32.mrb[0].mxu0
        %v1380 = vadd.f32 %v1302, %v1379
        %1381 = vdwg.mxu0
        %v1382 = vtanh.pop %v1372
        %v1383 = vtanh.pop %v1378
        %v1384 = vmul.f32 %v1382, 1.442695
        %v1385 = vpow.pop %v1384
        %v1386 = vmul.f32 %v1383, 1.442695
        %v1387 = vpow.pop %v1386
        %v1388 = vmul.f32 %v1136, %v1385
        %v1389 = vmul.f32 %v1137, %v1387
        %v1390 = vadd.f32 %v1388, %v1374
        %v1391 = vadd.f32 %v1389, %v1380
        %v1393 = vlaneseq
        %v1394 = vshrl.u32 %v1393, 7
        %v1395 = vsub.s32 0, %v1394
        %v1396 = vrot.slane %v1148, %v1395
        %v1398 = vmul.f32 %v1396, %v1390
        %v1399 = vmul.f32 %v1396, %v1391
        %v1400 = vadd.f32 %v1155, %v1398
        %v1401 = vadd.f32 %v1156, %v1399
        %v1402 = vmul.f32 %v1396, %v1382
        %v1403 = vmul.f32 %v1396, %v1383
        %1404 = vadd.xlane.f32.xlu0 %v1402
        %v1405 = vpop.xlane.xlu0 %1404
        %1406 = vadd.xlane.f32.xlu0 %v1403
        %v1407 = vpop.xlane.xlu0 %1406
        %v1408 = vadd.f32 %v1144, %v1405
        %v1409 = vadd.f32 %v1145, %v1407
        %1410 = vst [vmem:[%s341] sm:$0xff] %v1400
        %1411 = vst [vmem:[%s341 + $0x8] sm:$0xff] %v1401
        %vm1412 = vcmask 7168
        %1413 = vst.msk [vmem:[%s355] sm:$0xff] %vm1412, %v1408
        %1414 = vst.msk [vmem:[%s355 + $0x8] sm:$0xff] %vm1412, %v1409
        %s1415 = sand.u32 %s166, 1
        %s1416 = scalar_lea.sflag [#allocation4], %s1415
        %s1417 = sand.u32 %s166, 1
        %s1418 = smul.addr %s1417, 16
        %s1419 = scalar_lea.vmem [#allocation10], %s1418
        %s1420 = smul.u32 2, %s27
        %p1421 = scmp.lt.s32.totalorder %s1420, 3
        %s1422 = scalar_select %p1421, %s1420, 3
        %s1423 = smul.addr %s1422, 8
        %s1424 = scalar_lea.vmem %s7, %s1423
        // Predicated region
        $region61: #{tpu_custom_call.1} parent=43 // pred_check
          %p1425 = pneg %p176
        $region62: #{tpu_custom_call.1} parent=43 // pred_check_branch
          %1427 = sbr.rel (%p1425) target = $region64
        $region63: #{tpu_custom_call.1} parent=43 // pred_region
          %s1428 = smul.u32 2, %s27
          %s1430 = ssub.s32 256, 256
          %1431 = vsyncadd %s1416, %s1430
          %s1432 = smul.addr %s1428, 128
          %s1433 = scalar_lea.hbm %s6, %s1432
          %s1434 = sshll.u32 %s1419, 4
          %s1435 = int_to_ptr.vmem [resolvable:$true] %s1434
          %1440 = dma.vmem_to_hbm [thread:$0]  %s1435, 256, %s1433, %s1416, 128, 128, 8
        $region64: #{tpu_custom_call.1} parent=43 // pred_fallthru
          _
        // Predicated region
        $region65: #{tpu_custom_call.1} parent=43 // pred_check
          %p1441 = pneg %p202
        $region66: #{tpu_custom_call.1} parent=43 // pred_check_branch
          %1443 = sbr.rel (%p1441) target = $region68
        $region67: #{tpu_custom_call.1} parent=43 // pred_region
          %s1444 = smul.u32 2, %s27
        $region68: #{tpu_custom_call.1} parent=43 // pred_fallthru
          _
      $region44: #{tpu_custom_call.1} parent=5 // pred_fallthru
        _
      %p1445 = scmp.le.s32.totalorder 2, %s22
      // Predicated region
      $region69: #{tpu_custom_call.1} parent=5 // pred_check
        %p1446 = pneg %p1445
      $region70: #{tpu_custom_call.1} parent=5 // pred_check_branch
        %1448 = sbr.rel (%p1446) target = $region72
      $region71: #{tpu_custom_call.1} parent=5 // pred_region
        %s1449 = ssub.s32 %s22, 2
        // Predicated region
        $region73: #{tpu_custom_call.1} parent=71 // pred_check
          %p1450 = pneg %p182
        $region74: #{tpu_custom_call.1} parent=71 // pred_check_branch
          %1452 = sbr.rel (%p1450) target = $region76
        $region75: #{tpu_custom_call.1} parent=71 // pred_region
          %s1453 = sand.u32 %s167, 1
          %s1454 = scalar_lea.sflag [#allocation4], %s1453
          %s1455 = sand.u32 %s167, 1
          %s1456 = smul.addr %s1455, 16
          %s1457 = scalar_lea.vmem [#allocation10], %s1456
          %1458 = dma.done %s1454, 256
        $region76: #{tpu_custom_call.1} parent=71 // pred_fallthru
          _
        // Predicated region
        $region77: #{tpu_custom_call.1} parent=71 // pred_check
          %p1459 = pneg %p208
        $region78: #{tpu_custom_call.1} parent=71 // pred_check_branch
          %1461 = sbr.rel (%p1459) target = $region80
        $region79: #{tpu_custom_call.1} parent=71 // pred_region
          %s1462 = smul.u32 2, %s28
          %p1463 = scmp.lt.s32.totalorder %s1462, 3
          %s1464 = scalar_select %p1463, %s1462, 3
          %s1465 = smul.addr %s1464, 8
          %s1466 = scalar_lea.vmem %s7, %s1465
        $region80: #{tpu_custom_call.1} parent=71 // pred_fallthru
          _
      $region72: #{tpu_custom_call.1} parent=5 // pred_fallthru
        _
    $region6: #{tpu_custom_call.1} parent=1 // loop_footer
      %s26 = sadd.s32 1, %s22
    $region7: #{tpu_custom_call.1} parent=1 // loop_footer_branch
      %21 = sbr.rel target = $region3
    $region8: #{tpu_custom_call.1} parent=1 // loop_exit
      _
    %1467 = vsyncpa [#allocation3], 1
    %s1468 = scalar_lea.sflag [#allocation3], 1
    %1469 = vsyncpa %s1468, 1
    %1470 = vsyncpa [#allocation6], 1
    %1471 = vsyncpa [#allocation9], 1
    %1472 = vsyncpa [#allocation4], 1
    %s1473 = scalar_lea.sflag [#allocation4], 1
    %1474 = vsyncpa %s1473, 1

</llo_original>
